<compile_context>
chip_gen: v7x
topology: tpu7x:2x2x1
jax: 0.10.0
libtpu: 0.0.40
codegen_flags: <defaults>
</compile_context>

<pallas_src>
import functools

import jax
import jax.numpy as jnp
from jax.experimental import pallas as pl
from jax.experimental.pallas import tpu as pltpu

N_INPUT = 28 * 28  # 784

# Real (PyTorch) layer dims, as (in, out) per Linear, encoder then decoder.
IN_DIMS = [784, 128, 64, 12, 3, 12, 64, 128]
OUT_DIMS = [128, 64, 12, 3, 12, 64, 128, 784]
# Lane-dense padded dims used inside the kernel (zeros in the padding).
IN_PAD = [784, 128, 128, 128, 128, 128, 128, 128]
OUT_PAD = [128, 128, 128, 128, 128, 128, 128, 896]

ENC_OUT_PAD = OUT_PAD[3]   # 128 (real 3)
DEC_OUT_PAD = OUT_PAD[7]   # 896 (real 784)


def _round_up(n, m):
    return (n + m - 1) // m * m


def _ae_kernel(x_ref, *refs):
    """All 8 Linear layers + activations fused; one batch tile per grid step."""
    params = refs[:16]                 # w1,b1, ..., w8,b8 (padded; w bf16, b f32)
    enc_ref, dec_ref = refs[16], refs[17]

    # bf16 feeds the MXU; accumulate in f32; keep activations f32 for the VPU/EUP.
    hb = x_ref[...]                    # (TB, 784) bf16
    h32 = None

    # ---- encoder ----
    for i in range(4):
        w = params[2 * i][...]         # bf16 (in_pad, out_pad)
        b = params[2 * i + 1][...]     # f32  (1, out_pad)
        h32 = jnp.dot(hb, w, preferred_element_type=jnp.float32) + b
        if i < 3:
            h32 = jnp.tanh(h32)
        hb = h32.astype(jnp.bfloat16)
    enc_ref[...] = h32                 # (TB, 128) lane-dense; cols 3..127 are 0

    # ---- decoder ----
    for i in range(4):
        w = params[8 + 2 * i][...]
        b = params[8 + 2 * i + 1][...]
        h32 = jnp.dot(hb, w, preferred_element_type=jnp.float32) + b
        if i < 3:
            h32 = jnp.tanh(h32)
        else:
            # sigmoid(x) == 0.5 * (tanh(0.5*x) + 1): one EUP op + VPU scale/add.
            h32 = 0.5 * (jnp.tanh(0.5 * h32) + 1.0)
        hb = h32.astype(jnp.bfloat16)
    dec_ref[...] = h32                 # (TB, 896) lane-dense


@jax.jit
def autoencoder_forward(x, padded_params):
    """x: (B, 784) float32; padded_params: flat list [w1,b1,...,w8,b8] (padded)."""
    B = x.shape[0]
    # Batch tile: large enough to fill the MXU / amortize grid overhead, but
    # sized so 2x(x + dec + enc) buffers + ~0.6 MiB weights fit v7x's 32 MiB
    # default scoped VMEM. Small B falls back to a single tile.
    TB = min(512, _round_up(B, 8))
    Bp = _round_up(B, TB)

    xb = x.astype(jnp.bfloat16)
    if Bp != B:
        xb = jnp.pad(xb, ((0, Bp - B), (0, 0)))

    grid = (Bp // TB,)

    in_specs = [pl.BlockSpec((TB, N_INPUT), lambda i: (i, 0))]
    # Weights/biases: whole array as one block, constant index_map -> fetched
    # once and kept VMEM-resident across all batch tiles.
    in_specs += [pl.BlockSpec(p.shape, lambda i: (0, 0)) for p in padded_params]

    out_specs = (
        pl.BlockSpec((TB, ENC_OUT_PAD), lambda i: (i, 0)),
        pl.BlockSpec((TB, DEC_OUT_PAD), lambda i: (i, 0)),
    )
    out_shape = (
        jax.ShapeDtypeStruct((Bp, ENC_OUT_PAD), jnp.float32),
        jax.ShapeDtypeStruct((Bp, DEC_OUT_PAD), jnp.float32),
    )

    # Advisory cost hint (padded-layer FLOPs / EUP calls / HBM bytes).
    macs_per_row = sum(i * o for i, o in zip(IN_PAD, OUT_PAD))
    trans_per_row = sum(OUT_PAD[i] for i in (0, 1, 2, 4, 5, 6)) + OUT_PAD[7]
    weight_bytes = sum(i * o for i, o in zip(IN_PAD, OUT_PAD)) * 2 + sum(OUT_PAD) * 4
    cost = pl.CostEstimate(
        flops=2 * Bp * macs_per_row,
        transcendentals=Bp * trans_per_row,
        bytes_accessed=Bp * (N_INPUT * 2 + ENC_OUT_PAD * 4 + DEC_OUT_PAD * 4)
        + weight_bytes,
    )

    enc_p, dec_p = pl.pallas_call(
        _ae_kernel,
        out_shape=out_shape,
        grid_spec=pltpu.PrefetchScalarGridSpec(
            num_scalar_prefetch=0,
            grid=grid,
            in_specs=in_specs,
            out_specs=out_specs,
        ),
        compiler_params=pltpu.CompilerParams(
            dimension_semantics=("parallel",),
        ),
        cost_estimate=cost,
    )(xb, *padded_params)

    # Slice away batch padding and lane padding.
    return enc_p[:B, :OUT_DIMS[3]], dec_p[:B, :OUT_DIMS[7]]


def init_params(key):
    """f32 params with true PyTorch shapes: W (in, out), b (1, out);
    nn.Linear-style U(-1/sqrt(fan_in), +1/sqrt(fan_in)) init."""
    params = []
    for fan_in, fan_out in zip(IN_DIMS, OUT_DIMS):
        key, kw, kb = jax.random.split(key, 3)
        bound = 1.0 / jnp.sqrt(fan_in)
        w = jax.random.uniform(kw, (fan_in, fan_out), jnp.float32, -bound, bound)
        b = jax.random.uniform(kb, (1, fan_out), jnp.float32, -bound, bound)
        params += [w, b]
    return params


def prepare_params(params_f32):
    """Zero-pad every layer to lane-dense padded shapes; weights -> bf16."""
    padded = []
    for li in range(8):
        w = params_f32[2 * li]
        b = params_f32[2 * li + 1]
        in_d, out_d = w.shape
        in_p, out_p = IN_PAD[li], OUT_PAD[li]
        wp = jnp.zeros((in_p, out_p), jnp.bfloat16)
        wp = wp.at[:in_d, :out_d].set(w.astype(jnp.bfloat16))
        bp = jnp.zeros((1, out_p), jnp.float32)
        bp = bp.at[:, :out_d].set(b)
        padded += [wp, bp]
    return padded


def reference_forward(x, params_f32):
    """Pure-JAX reference mirroring the kernel's numerics (bf16 MXU inputs,
    f32 accumulation / activations)."""
    h = x.astype(jnp.float32)
    enc = None
    for i in range(8):
        w = params_f32[2 * i].astype(jnp.bfloat16)
        b = params_f32[2 * i + 1]
        h = jnp.dot(h.astype(jnp.bfloat16), w,
                    preferred_element_type=jnp.float32) + b
        if i in (0, 1, 2, 4, 5, 6):
            h = jnp.tanh(h)
        elif i == 7:
            h = jax.nn.sigmoid(h)
        if i == 3:
            enc = h
    return enc, h


if __name__ == "__main__":
    key = jax.random.PRNGKey(0)
    key, kx = jax.random.split(key)
    B = 8
    x = jax.random.uniform(kx, (B, N_INPUT), jnp.float32)  # MNIST-like pixels

    raw_params = init_params(key)
    padded_params = prepare_params(raw_params)

    enc, dec = autoencoder_forward(x, padded_params)
    jax.block_until_ready((enc, dec))

    enc_ref, dec_ref = reference_forward(x, raw_params)
    assert enc.shape == (B, 3) and dec.shape == (B, N_INPUT)
    # bf16 MXU inputs: allow quantization-level tolerance.
    assert jnp.allclose(enc, enc_ref, atol=1e-2, rtol=1e-2)
    assert jnp.allclose(dec, dec_ref, atol=1e-2, rtol=1e-2)

    print("KERNEL_OK")
</pallas_src>

<mosaic_0001>
module attributes {stable_mosaic.version = 11 : i64} {
  func.func @_ae_kernel(%arg0: i32, %arg1: memref<8x784xbf16, #tpu.memory_space<vmem>>, %arg2: memref<784x128xbf16, #tpu.memory_space<vmem>>, %arg3: memref<1x128xf32, #tpu.memory_space<vmem>>, %arg4: memref<128x128xbf16, #tpu.memory_space<vmem>>, %arg5: memref<1x128xf32, #tpu.memory_space<vmem>>, %arg6: memref<128x128xbf16, #tpu.memory_space<vmem>>, %arg7: memref<1x128xf32, #tpu.memory_space<vmem>>, %arg8: memref<128x128xbf16, #tpu.memory_space<vmem>>, %arg9: memref<1x128xf32, #tpu.memory_space<vmem>>, %arg10: memref<128x128xbf16, #tpu.memory_space<vmem>>, %arg11: memref<1x128xf32, #tpu.memory_space<vmem>>, %arg12: memref<128x128xbf16, #tpu.memory_space<vmem>>, %arg13: memref<1x128xf32, #tpu.memory_space<vmem>>, %arg14: memref<128x128xbf16, #tpu.memory_space<vmem>>, %arg15: memref<1x128xf32, #tpu.memory_space<vmem>>, %arg16: memref<128x896xbf16, #tpu.memory_space<vmem>>, %arg17: memref<1x896xf32, #tpu.memory_space<vmem>>, %arg18: memref<8x128xf32, #tpu.memory_space<vmem>>, %arg19: memref<8x896xf32, #tpu.memory_space<vmem>>) attributes {dimension_semantics = [#tpu.dimension_semantics<parallel>], iteration_bounds = array<i64: 1>, scalar_prefetch = 0 : i64, scratch_operands = 0 : i64, tpu.core_type = #tpu.core_type<tc>, window_params = [{transform_indices = @transform_0, window_bounds = array<i64: 8, 784>}, {pipeline_mode = #tpu.pipeline_mode<synchronous>, transform_indices = @transform_1, window_bounds = array<i64: 784, 128>}, {pipeline_mode = #tpu.pipeline_mode<synchronous>, transform_indices = @transform_2, window_bounds = array<i64: 1, 128>}, {pipeline_mode = #tpu.pipeline_mode<synchronous>, transform_indices = @transform_3, window_bounds = array<i64: 128, 128>}, {pipeline_mode = #tpu.pipeline_mode<synchronous>, transform_indices = @transform_4, window_bounds = array<i64: 1, 128>}, {pipeline_mode = #tpu.pipeline_mode<synchronous>, transform_indices = @transform_5, window_bounds = array<i64: 128, 128>}, {pipeline_mode = #tpu.pipeline_mode<synchronous>, transform_indices = @transform_6, window_bounds = array<i64: 1, 128>}, {pipeline_mode = #tpu.pipeline_mode<synchronous>, transform_indices = @transform_7, window_bounds = array<i64: 128, 128>}, {pipeline_mode = #tpu.pipeline_mode<synchronous>, transform_indices = @transform_8, window_bounds = array<i64: 1, 128>}, {pipeline_mode = #tpu.pipeline_mode<synchronous>, transform_indices = @transform_9, window_bounds = array<i64: 128, 128>}, {pipeline_mode = #tpu.pipeline_mode<synchronous>, transform_indices = @transform_10, window_bounds = array<i64: 1, 128>}, {pipeline_mode = #tpu.pipeline_mode<synchronous>, transform_indices = @transform_11, window_bounds = array<i64: 128, 128>}, {pipeline_mode = #tpu.pipeline_mode<synchronous>, transform_indices = @transform_12, window_bounds = array<i64: 1, 128>}, {pipeline_mode = #tpu.pipeline_mode<synchronous>, transform_indices = @transform_13, window_bounds = array<i64: 128, 128>}, {pipeline_mode = #tpu.pipeline_mode<synchronous>, transform_indices = @transform_14, window_bounds = array<i64: 1, 128>}, {pipeline_mode = #tpu.pipeline_mode<synchronous>, transform_indices = @transform_15, window_bounds = array<i64: 128, 896>}, {pipeline_mode = #tpu.pipeline_mode<synchronous>, transform_indices = @transform_16, window_bounds = array<i64: 1, 896>}, {transform_indices = @transform_17, window_bounds = array<i64: 8, 128>}, {transform_indices = @transform_18, window_bounds = array<i64: 8, 896>}]} {
    %c0 = arith.constant 0 : index
    %c0_0 = arith.constant 0 : index
    %0 = vector.load %arg1[%c0, %c0_0] : memref<8x784xbf16, #tpu.memory_space<vmem>>, vector<8x784xbf16>
    %c0_1 = arith.constant 0 : index
    %c0_2 = arith.constant 0 : index
    %1 = vector.load %arg2[%c0_1, %c0_2] : memref<784x128xbf16, #tpu.memory_space<vmem>>, vector<784x128xbf16>
    %c0_3 = arith.constant 0 : index
    %c0_4 = arith.constant 0 : index
    %2 = vector.load %arg3[%c0_3, %c0_4] : memref<1x128xf32, #tpu.memory_space<vmem>>, vector<1x128xf32>
    %cst = arith.constant dense<0.000000e+00> : vector<8x128xf32>
    %3 = tpu.matmul %0, %1, %cst {dimension_numbers = #tpu.dot_dimension_numbers<[1], [0], [0], [1], [0, 0, 1, 1], [], []>} : vector<8x784xbf16>, vector<784x128xbf16>, vector<8x128xf32> -> vector<8x128xf32>
    %4 = vector.broadcast %2 : vector<1x128xf32> to vector<8x128xf32>
    %5 = arith.addf %3, %4 : vector<8x128xf32>
    %6 = math.tanh %5 : vector<8x128xf32>
    %7 = arith.truncf %6 : vector<8x128xf32> to vector<8x128xbf16>
    %c0_5 = arith.constant 0 : index
    %c0_6 = arith.constant 0 : index
    %8 = vector.load %arg4[%c0_5, %c0_6] : memref<128x128xbf16, #tpu.memory_space<vmem>>, vector<128x128xbf16>
    %c0_7 = arith.constant 0 : index
    %c0_8 = arith.constant 0 : index
    %9 = vector.load %arg5[%c0_7, %c0_8] : memref<1x128xf32, #tpu.memory_space<vmem>>, vector<1x128xf32>
    %cst_9 = arith.constant dense<0.000000e+00> : vector<8x128xf32>
    %10 = tpu.matmul %7, %8, %cst_9 {dimension_numbers = #tpu.dot_dimension_numbers<[1], [0], [0], [1], [0, 0, 1, 1], [], []>} : vector<8x128xbf16>, vector<128x128xbf16>, vector<8x128xf32> -> vector<8x128xf32>
    %11 = vector.broadcast %9 : vector<1x128xf32> to vector<8x128xf32>
    %12 = arith.addf %10, %11 : vector<8x128xf32>
    %13 = math.tanh %12 : vector<8x128xf32>
    %14 = arith.truncf %13 : vector<8x128xf32> to vector<8x128xbf16>
    %c0_10 = arith.constant 0 : index
    %c0_11 = arith.constant 0 : index
    %15 = vector.load %arg6[%c0_10, %c0_11] : memref<128x128xbf16, #tpu.memory_space<vmem>>, vector<128x128xbf16>
    %c0_12 = arith.constant 0 : index
    %c0_13 = arith.constant 0 : index
    %16 = vector.load %arg7[%c0_12, %c0_13] : memref<1x128xf32, #tpu.memory_space<vmem>>, vector<1x128xf32>
    %cst_14 = arith.constant dense<0.000000e+00> : vector<8x128xf32>
    %17 = tpu.matmul %14, %15, %cst_14 {dimension_numbers = #tpu.dot_dimension_numbers<[1], [0], [0], [1], [0, 0, 1, 1], [], []>} : vector<8x128xbf16>, vector<128x128xbf16>, vector<8x128xf32> -> vector<8x128xf32>
    %18 = vector.broadcast %16 : vector<1x128xf32> to vector<8x128xf32>
    %19 = arith.addf %17, %18 : vector<8x128xf32>
    %20 = math.tanh %19 : vector<8x128xf32>
    %21 = arith.truncf %20 : vector<8x128xf32> to vector<8x128xbf16>
    %c0_15 = arith.constant 0 : index
    %c0_16 = arith.constant 0 : index
    %22 = vector.load %arg8[%c0_15, %c0_16] : memref<128x128xbf16, #tpu.memory_space<vmem>>, vector<128x128xbf16>
    %c0_17 = arith.constant 0 : index
    %c0_18 = arith.constant 0 : index
    %23 = vector.load %arg9[%c0_17, %c0_18] : memref<1x128xf32, #tpu.memory_space<vmem>>, vector<1x128xf32>
    %cst_19 = arith.constant dense<0.000000e+00> : vector<8x128xf32>
    %24 = tpu.matmul %21, %22, %cst_19 {dimension_numbers = #tpu.dot_dimension_numbers<[1], [0], [0], [1], [0, 0, 1, 1], [], []>} : vector<8x128xbf16>, vector<128x128xbf16>, vector<8x128xf32> -> vector<8x128xf32>
    %25 = vector.broadcast %23 : vector<1x128xf32> to vector<8x128xf32>
    %26 = arith.addf %24, %25 : vector<8x128xf32>
    %27 = arith.truncf %26 : vector<8x128xf32> to vector<8x128xbf16>
    %c0_20 = arith.constant 0 : index
    %c0_21 = arith.constant 0 : index
    %28 = vector.load %arg18[%c0_20, %c0_21] : memref<8x128xf32, #tpu.memory_space<vmem>>, vector<8x128xf32>
    tpu.vector_store %arg18[%c0_20, %c0_21], %26 {strides = array<i32>} : memref<8x128xf32, #tpu.memory_space<vmem>>, vector<8x128xf32>,
    %c0_22 = arith.constant 0 : index
    %c0_23 = arith.constant 0 : index
    %29 = vector.load %arg10[%c0_22, %c0_23] : memref<128x128xbf16, #tpu.memory_space<vmem>>, vector<128x128xbf16>
    %c0_24 = arith.constant 0 : index
    %c0_25 = arith.constant 0 : index
    %30 = vector.load %arg11[%c0_24, %c0_25] : memref<1x128xf32, #tpu.memory_space<vmem>>, vector<1x128xf32>
    %cst_26 = arith.constant dense<0.000000e+00> : vector<8x128xf32>
    %31 = tpu.matmul %27, %29, %cst_26 {dimension_numbers = #tpu.dot_dimension_numbers<[1], [0], [0], [1], [0, 0, 1, 1], [], []>} : vector<8x128xbf16>, vector<128x128xbf16>, vector<8x128xf32> -> vector<8x128xf32>
    %32 = vector.broadcast %30 : vector<1x128xf32> to vector<8x128xf32>
    %33 = arith.addf %31, %32 : vector<8x128xf32>
    %34 = math.tanh %33 : vector<8x128xf32>
    %35 = arith.truncf %34 : vector<8x128xf32> to vector<8x128xbf16>
    %c0_27 = arith.constant 0 : index
    %c0_28 = arith.constant 0 : index
    %36 = vector.load %arg12[%c0_27, %c0_28] : memref<128x128xbf16, #tpu.memory_space<vmem>>, vector<128x128xbf16>
    %c0_29 = arith.constant 0 : index
    %c0_30 = arith.constant 0 : index
    %37 = vector.load %arg13[%c0_29, %c0_30] : memref<1x128xf32, #tpu.memory_space<vmem>>, vector<1x128xf32>
    %cst_31 = arith.constant dense<0.000000e+00> : vector<8x128xf32>
    %38 = tpu.matmul %35, %36, %cst_31 {dimension_numbers = #tpu.dot_dimension_numbers<[1], [0], [0], [1], [0, 0, 1, 1], [], []>} : vector<8x128xbf16>, vector<128x128xbf16>, vector<8x128xf32> -> vector<8x128xf32>
    %39 = vector.broadcast %37 : vector<1x128xf32> to vector<8x128xf32>
    %40 = arith.addf %38, %39 : vector<8x128xf32>
    %41 = math.tanh %40 : vector<8x128xf32>
    %42 = arith.truncf %41 : vector<8x128xf32> to vector<8x128xbf16>
    %c0_32 = arith.constant 0 : index
    %c0_33 = arith.constant 0 : index
    %43 = vector.load %arg14[%c0_32, %c0_33] : memref<128x128xbf16, #tpu.memory_space<vmem>>, vector<128x128xbf16>
    %c0_34 = arith.constant 0 : index
    %c0_35 = arith.constant 0 : index
    %44 = vector.load %arg15[%c0_34, %c0_35] : memref<1x128xf32, #tpu.memory_space<vmem>>, vector<1x128xf32>
    %cst_36 = arith.constant dense<0.000000e+00> : vector<8x128xf32>
    %45 = tpu.matmul %42, %43, %cst_36 {dimension_numbers = #tpu.dot_dimension_numbers<[1], [0], [0], [1], [0, 0, 1, 1], [], []>} : vector<8x128xbf16>, vector<128x128xbf16>, vector<8x128xf32> -> vector<8x128xf32>
    %46 = vector.broadcast %44 : vector<1x128xf32> to vector<8x128xf32>
    %47 = arith.addf %45, %46 : vector<8x128xf32>
    %48 = math.tanh %47 : vector<8x128xf32>
    %49 = arith.truncf %48 : vector<8x128xf32> to vector<8x128xbf16>
    %c0_37 = arith.constant 0 : index
    %c0_38 = arith.constant 0 : index
    %50 = vector.load %arg16[%c0_37, %c0_38] : memref<128x896xbf16, #tpu.memory_space<vmem>>, vector<128x896xbf16>
    %c0_39 = arith.constant 0 : index
    %c0_40 = arith.constant 0 : index
    %51 = vector.load %arg17[%c0_39, %c0_40] : memref<1x896xf32, #tpu.memory_space<vmem>>, vector<1x896xf32>
    %cst_41 = arith.constant dense<0.000000e+00> : vector<8x896xf32>
    %52 = tpu.matmul %49, %50, %cst_41 {dimension_numbers = #tpu.dot_dimension_numbers<[1], [0], [0], [1], [0, 0, 1, 1], [], []>} : vector<8x128xbf16>, vector<128x896xbf16>, vector<8x896xf32> -> vector<8x896xf32>
    %53 = vector.broadcast %51 : vector<1x896xf32> to vector<8x896xf32>
    %54 = arith.addf %52, %53 : vector<8x896xf32>
    %cst_42 = arith.constant 5.000000e-01 : f32
    %55 = vector.broadcast %cst_42 : f32 to vector<8x896xf32>
    %56 = arith.mulf %55, %54 : vector<8x896xf32>
    %57 = math.tanh %56 : vector<8x896xf32>
    %cst_43 = arith.constant 1.000000e+00 : f32
    %58 = vector.broadcast %cst_43 : f32 to vector<8x896xf32>
    %59 = arith.addf %57, %58 : vector<8x896xf32>
    %cst_44 = arith.constant 5.000000e-01 : f32
    %60 = vector.broadcast %cst_44 : f32 to vector<8x896xf32>
    %61 = arith.mulf %60, %59 : vector<8x896xf32>
    %c0_45 = arith.constant 0 : index
    %c0_46 = arith.constant 0 : index
    %62 = vector.load %arg19[%c0_45, %c0_46] : memref<8x896xf32, #tpu.memory_space<vmem>>, vector<8x896xf32>
    tpu.vector_store %arg19[%c0_45, %c0_46], %61 {strides = array<i32>} : memref<8x896xf32, #tpu.memory_space<vmem>>, vector<8x896xf32>,
    return
  }
  func.func @transform_0(%arg0: i32) -> (i32, i32) {
    %c0_i32 = arith.constant 0 : i32
    %c0_i32_0 = arith.constant 0 : i32
    return %arg0, %c0_i32 : i32, i32
  }
  func.func @transform_1(%arg0: i32) -> (i32, i32) {
    %c0_i32 = arith.constant 0 : i32
    %c0_i32_0 = arith.constant 0 : i32
    %c0_i32_1 = arith.constant 0 : i32
    return %c0_i32, %c0_i32_0 : i32, i32
  }
  func.func @transform_2(%arg0: i32) -> (i32, i32) {
    %c0_i32 = arith.constant 0 : i32
    %c0_i32_0 = arith.constant 0 : i32
    %c0_i32_1 = arith.constant 0 : i32
    return %c0_i32, %c0_i32_0 : i32, i32
  }
  func.func @transform_3(%arg0: i32) -> (i32, i32) {
    %c0_i32 = arith.constant 0 : i32
    %c0_i32_0 = arith.constant 0 : i32
    %c0_i32_1 = arith.constant 0 : i32
    return %c0_i32, %c0_i32_0 : i32, i32
  }
  func.func @transform_4(%arg0: i32) -> (i32, i32) {
    %c0_i32 = arith.constant 0 : i32
    %c0_i32_0 = arith.constant 0 : i32
    %c0_i32_1 = arith.constant 0 : i32
    return %c0_i32, %c0_i32_0 : i32, i32
  }
  func.func @transform_5(%arg0: i32) -> (i32, i32) {
    %c0_i32 = arith.constant 0 : i32
    %c0_i32_0 = arith.constant 0 : i32
    %c0_i32_1 = arith.constant 0 : i32
    return %c0_i32, %c0_i32_0 : i32, i32
  }
  func.func @transform_6(%arg0: i32) -> (i32, i32) {
    %c0_i32 = arith.constant 0 : i32
    %c0_i32_0 = arith.constant 0 : i32
    %c0_i32_1 = arith.constant 0 : i32
    return %c0_i32, %c0_i32_0 : i32, i32
  }
  func.func @transform_7(%arg0: i32) -> (i32, i32) {
    %c0_i32 = arith.constant 0 : i32
    %c0_i32_0 = arith.constant 0 : i32
    %c0_i32_1 = arith.constant 0 : i32
    return %c0_i32, %c0_i32_0 : i32, i32
  }
  func.func @transform_8(%arg0: i32) -> (i32, i32) {
    %c0_i32 = arith.constant 0 : i32
    %c0_i32_0 = arith.constant 0 : i32
    %c0_i32_1 = arith.constant 0 : i32
    return %c0_i32, %c0_i32_0 : i32, i32
  }
  func.func @transform_9(%arg0: i32) -> (i32, i32) {
    %c0_i32 = arith.constant 0 : i32
    %c0_i32_0 = arith.constant 0 : i32
    %c0_i32_1 = arith.constant 0 : i32
    return %c0_i32, %c0_i32_0 : i32, i32
  }
  func.func @transform_10(%arg0: i32) -> (i32, i32) {
    %c0_i32 = arith.constant 0 : i32
    %c0_i32_0 = arith.constant 0 : i32
    %c0_i32_1 = arith.constant 0 : i32
    return %c0_i32, %c0_i32_0 : i32, i32
  }
  func.func @transform_11(%arg0: i32) -> (i32, i32) {
    %c0_i32 = arith.constant 0 : i32
    %c0_i32_0 = arith.constant 0 : i32
    %c0_i32_1 = arith.constant 0 : i32
    return %c0_i32, %c0_i32_0 : i32, i32
  }
  func.func @transform_12(%arg0: i32) -> (i32, i32) {
    %c0_i32 = arith.constant 0 : i32
    %c0_i32_0 = arith.constant 0 : i32
    %c0_i32_1 = arith.constant 0 : i32
    return %c0_i32, %c0_i32_0 : i32, i32
  }
  func.func @transform_13(%arg0: i32) -> (i32, i32) {
    %c0_i32 = arith.constant 0 : i32
    %c0_i32_0 = arith.constant 0 : i32
    %c0_i32_1 = arith.constant 0 : i32
    return %c0_i32, %c0_i32_0 : i32, i32
  }
  func.func @transform_14(%arg0: i32) -> (i32, i32) {
    %c0_i32 = arith.constant 0 : i32
    %c0_i32_0 = arith.constant 0 : i32
    %c0_i32_1 = arith.constant 0 : i32
    return %c0_i32, %c0_i32_0 : i32, i32
  }
  func.func @transform_15(%arg0: i32) -> (i32, i32) {
    %c0_i32 = arith.constant 0 : i32
    %c0_i32_0 = arith.constant 0 : i32
    %c0_i32_1 = arith.constant 0 : i32
    return %c0_i32, %c0_i32_0 : i32, i32
  }
  func.func @transform_16(%arg0: i32) -> (i32, i32) {
    %c0_i32 = arith.constant 0 : i32
    %c0_i32_0 = arith.constant 0 : i32
    %c0_i32_1 = arith.constant 0 : i32
    return %c0_i32, %c0_i32_0 : i32, i32
  }
  func.func @transform_17(%arg0: i32) -> (i32, i32) {
    %c0_i32 = arith.constant 0 : i32
    %c0_i32_0 = arith.constant 0 : i32
    return %arg0, %c0_i32 : i32, i32
  }
  func.func @transform_18(%arg0: i32) -> (i32, i32) {
    %c0_i32 = arith.constant 0 : i32
    %c0_i32_0 = arith.constant 0 : i32
    return %arg0, %c0_i32 : i32, i32
  }
}

</mosaic_0001>

<llo_original>
// kernel: autoencoder_forward.1
$region0: #{autoencoder_forward.1}
  #allocation0 [shape = 'u32[]', space=smem, size = 0x4, offset = 0x4, fixed_abs, tag = 'smem constant byte address 0x4 - core index']
  #allocation1 [shape = 'u32[144,128]{1,0:T(1,128)}', space=vmem, size = 0x12000, scoped, tag = 'internal scratch']
  %s0 = inlined_call_operand.vmem [shape: bf16[8,784], index: 0, kind: input, shape index: {}]
  %s1 = inlined_call_operand.hbm [shape: bf16[784,128], index: 1, kind: input, shape index: {}]
  %s2 = inlined_call_operand.vmem [shape: f32[1,128], index: 2, kind: input, shape index: {}]
  %s3 = inlined_call_operand.vmem [shape: bf16[128,128], index: 3, kind: input, shape index: {}]
  %s4 = inlined_call_operand.hbm [shape: f32[1,128], index: 4, kind: input, shape index: {}]
  %s5 = inlined_call_operand.hbm [shape: bf16[128,128], index: 5, kind: input, shape index: {}]
  %s6 = inlined_call_operand.hbm [shape: f32[1,128], index: 6, kind: input, shape index: {}]
  %s7 = inlined_call_operand.hbm [shape: bf16[128,128], index: 7, kind: input, shape index: {}]
  %s8 = inlined_call_operand.hbm [shape: f32[1,128], index: 8, kind: input, shape index: {}]
  %s9 = inlined_call_operand.hbm [shape: bf16[128,128], index: 9, kind: input, shape index: {}]
  %s10 = inlined_call_operand.hbm [shape: f32[1,128], index: 10, kind: input, shape index: {}]
  %s11 = inlined_call_operand.hbm [shape: bf16[128,128], index: 11, kind: input, shape index: {}]
  %s12 = inlined_call_operand.hbm [shape: f32[1,128], index: 12, kind: input, shape index: {}]
  %s13 = inlined_call_operand.vmem [shape: bf16[128,128], index: 13, kind: input, shape index: {}]
  %s14 = inlined_call_operand.vmem [shape: f32[1,128], index: 14, kind: input, shape index: {}]
  %s15 = inlined_call_operand.hbm [shape: bf16[128,896], index: 15, kind: input, shape index: {}]
  %s16 = inlined_call_operand.vmem [shape: f32[1,896], index: 16, kind: input, shape index: {}]
  %s17 = inlined_call_operand.vmem [shape: f32[8,128], index: 17, kind: output, shape index: {0}]
  %s18 = inlined_call_operand.hbm [shape: f32[8,896], index: 18, kind: output, shape index: {1}]
  %19 = xla_tuple %s17, %s18
  %s20 = sld [smem:[#allocation0]]
  $region130: #{autoencoder_forward.1} parent=0
    _
  %s22 = ssub.s32 1, %s20
  %s23 = scalar_select 0, %s22, %s20
  $region1: #{autoencoder_forward.1} parent=0
    #allocation2 [shape = 'u8[200704]{0}', space=vmem, size = 0x31000, scoped, tag = 'input window, operand 1, single buffered']
    #allocation3 [shape = 's32[1]{0}', space=sflag, size = 0x4, scoped, tag = 'scoped memory for autoencoder_forward.1']
    #allocation4 [shape = 's32[1]{0}', space=sflag, size = 0x4, scoped, tag = 'scoped memory for autoencoder_forward.1']
    #allocation5 [shape = 'u8[512]{0}', space=vmem, size = 0x400, scoped, tag = 'input window, operand 4, single buffered']
    #allocation6 [shape = 's32[1]{0}', space=sflag, size = 0x4, scoped, tag = 'scoped memory for autoencoder_forward.1']
    #allocation7 [shape = 'u8[32768]{0}', space=vmem, size = 0x8000, scoped, tag = 'input window, operand 5, single buffered']
    #allocation8 [shape = 'u8[512]{0}', space=vmem, size = 0x400, scoped, tag = 'input window, operand 6, single buffered']
    #allocation9 [shape = 's32[1]{0}', space=sflag, size = 0x4, scoped, tag = 'scoped memory for autoencoder_forward.1']
    #allocation10 [shape = 'u8[32768]{0}', space=vmem, size = 0x8000, scoped, tag = 'input window, operand 7, single buffered']
    #allocation11 [shape = 'u8[512]{0}', space=vmem, size = 0x400, scoped, tag = 'input window, operand 8, single buffered']
    #allocation12 [shape = 's32[1]{0}', space=sflag, size = 0x4, scoped, tag = 'scoped memory for autoencoder_forward.1']
    #allocation13 [shape = 'u8[32768]{0}', space=vmem, size = 0x8000, scoped, tag = 'input window, operand 9, single buffered']
    #allocation14 [shape = 'u8[512]{0}', space=vmem, size = 0x400, scoped, tag = 'input window, operand 10, single buffered']
    #allocation15 [shape = 's32[1]{0}', space=sflag, size = 0x4, scoped, tag = 'scoped memory for autoencoder_forward.1']
    #allocation16 [shape = 'u8[32768]{0}', space=vmem, size = 0x8000, scoped, tag = 'input window, operand 11, single buffered']
    #allocation17 [shape = 'u8[512]{0}', space=vmem, size = 0x400, scoped, tag = 'input window, operand 12, single buffered']
    #allocation18 [shape = 's32[1]{0}', space=sflag, size = 0x4, scoped, tag = 'scoped memory for autoencoder_forward.1']
    #allocation19 [shape = 'u8[229376]{0}', space=vmem, size = 0x38000, scoped, tag = 'input window, operand 15, single buffered']
    #allocation20 [shape = 'u8[28672]{0}', space=vmem, size = 0x7000, scoped, tag = 'output window, operand 1, single buffered']
    %24 = vsyncpa [#allocation3], 0
    %25 = vsyncpa [#allocation6], 0
    %26 = vsyncpa [#allocation9], 0
    %27 = vsyncpa [#allocation12], 0
    %28 = vsyncpa [#allocation15], 0
    %29 = vsyncpa [#allocation18], 0
    %30 = vsyncpa [#allocation4], 0
    // Predicated region
    $region2: #{autoencoder_forward.1} parent=1 // pred_check
      _
    $region3: #{autoencoder_forward.1} parent=1 // pred_check_branch
      %32 = sbr.rel (0) target = $region5
    $region4: #{autoencoder_forward.1} parent=1 // pred_region
      _
    $region5: #{autoencoder_forward.1} parent=1 // pred_fallthru
      _
    // Predicated region
    $region6: #{autoencoder_forward.1} parent=1 // pred_check
      _
    $region7: #{autoencoder_forward.1} parent=1 // pred_check_branch
      %34 = sbr.rel (0) target = $region9
    $region8: #{autoencoder_forward.1} parent=1 // pred_region
      %s36 = ssub.s32 6272, 6272
      %37 = vsyncadd [#allocation3], %s36
      %s38 = sshll.u32 [#allocation2], 4
      %s39 = int_to_ptr.vmem [resolvable:$true] %s38
      %44 = dma.hbm_to_vmem [thread:$0]  %s1, 6272, %s39, [#allocation3], 64, 64, 4
    $region9: #{autoencoder_forward.1} parent=1 // pred_fallthru
      _
    // Predicated region
    $region10: #{autoencoder_forward.1} parent=1 // pred_check
      _
    $region11: #{autoencoder_forward.1} parent=1 // pred_check_branch
      %46 = sbr.rel (0) target = $region13
    $region12: #{autoencoder_forward.1} parent=1 // pred_region
      _
    $region13: #{autoencoder_forward.1} parent=1 // pred_fallthru
      _
    // Predicated region
    $region14: #{autoencoder_forward.1} parent=1 // pred_check
      _
    $region15: #{autoencoder_forward.1} parent=1 // pred_check_branch
      %48 = sbr.rel (0) target = $region17
    $region16: #{autoencoder_forward.1} parent=1 // pred_region
      _
    $region17: #{autoencoder_forward.1} parent=1 // pred_fallthru
      _
    // Predicated region
    $region18: #{autoencoder_forward.1} parent=1 // pred_check
      _
    $region19: #{autoencoder_forward.1} parent=1 // pred_check_branch
      %50 = sbr.rel (0) target = $region21
    $region20: #{autoencoder_forward.1} parent=1 // pred_region
      %s52 = ssub.s32 16, 16
      %53 = vsyncadd [#allocation6], %s52
      %s55 = sshll.u32 [#allocation5], 4
      %s56 = int_to_ptr.vmem [resolvable:$true] %s55
      %58 = dma.hbm_to_vmem [thread:$0]  %s4, 16, %s56, [#allocation6]
    $region21: #{autoencoder_forward.1} parent=1 // pred_fallthru
      _
    // Predicated region
    $region22: #{autoencoder_forward.1} parent=1 // pred_check
      _
    $region23: #{autoencoder_forward.1} parent=1 // pred_check_branch
      %60 = sbr.rel (0) target = $region25
    $region24: #{autoencoder_forward.1} parent=1 // pred_region
      %s62 = ssub.s32 1024, 1024
      %63 = vsyncadd [#allocation6], %s62
      %s64 = sshll.u32 [#allocation7], 4
      %s65 = int_to_ptr.vmem [resolvable:$true] %s64
      %70 = dma.hbm_to_vmem [thread:$0]  %s5, 1024, %s65, [#allocation6], 64, 64, 4
    $region25: #{autoencoder_forward.1} parent=1 // pred_fallthru
      _
    // Predicated region
    $region26: #{autoencoder_forward.1} parent=1 // pred_check
      _
    $region27: #{autoencoder_forward.1} parent=1 // pred_check_branch
      %72 = sbr.rel (0) target = $region29
    $region28: #{autoencoder_forward.1} parent=1 // pred_region
      %s74 = ssub.s32 16, 16
      %75 = vsyncadd [#allocation9], %s74
      %s77 = sshll.u32 [#allocation8], 4
      %s78 = int_to_ptr.vmem [resolvable:$true] %s77
      %80 = dma.hbm_to_vmem [thread:$0]  %s6, 16, %s78, [#allocation9]
    $region29: #{autoencoder_forward.1} parent=1 // pred_fallthru
      _
    // Predicated region
    $region30: #{autoencoder_forward.1} parent=1 // pred_check
      _
    $region31: #{autoencoder_forward.1} parent=1 // pred_check_branch
      %82 = sbr.rel (0) target = $region33
    $region32: #{autoencoder_forward.1} parent=1 // pred_region
      %s84 = ssub.s32 1024, 1024
      %85 = vsyncadd [#allocation9], %s84
      %s86 = sshll.u32 [#allocation10], 4
      %s87 = int_to_ptr.vmem [resolvable:$true] %s86
      %92 = dma.hbm_to_vmem [thread:$0]  %s7, 1024, %s87, [#allocation9], 64, 64, 4
    $region33: #{autoencoder_forward.1} parent=1 // pred_fallthru
      _
    // Predicated region
    $region34: #{autoencoder_forward.1} parent=1 // pred_check
      _
    $region35: #{autoencoder_forward.1} parent=1 // pred_check_branch
      %94 = sbr.rel (0) target = $region37
    $region36: #{autoencoder_forward.1} parent=1 // pred_region
      %s96 = ssub.s32 16, 16
      %97 = vsyncadd [#allocation12], %s96
      %s99 = sshll.u32 [#allocation11], 4
      %s100 = int_to_ptr.vmem [resolvable:$true] %s99
      %102 = dma.hbm_to_vmem [thread:$0]  %s8, 16, %s100, [#allocation12]
    $region37: #{autoencoder_forward.1} parent=1 // pred_fallthru
      _
    // Predicated region
    $region38: #{autoencoder_forward.1} parent=1 // pred_check
      _
    $region39: #{autoencoder_forward.1} parent=1 // pred_check_branch
      %104 = sbr.rel (0) target = $region41
    $region40: #{autoencoder_forward.1} parent=1 // pred_region
      %s106 = ssub.s32 1024, 1024
      %107 = vsyncadd [#allocation12], %s106
      %s108 = sshll.u32 [#allocation13], 4
      %s109 = int_to_ptr.vmem [resolvable:$true] %s108
      %114 = dma.hbm_to_vmem [thread:$0]  %s9, 1024, %s109, [#allocation12], 64, 64, 4
    $region41: #{autoencoder_forward.1} parent=1 // pred_fallthru
      _
    // Predicated region
    $region42: #{autoencoder_forward.1} parent=1 // pred_check
      _
    $region43: #{autoencoder_forward.1} parent=1 // pred_check_branch
      %116 = sbr.rel (0) target = $region45
    $region44: #{autoencoder_forward.1} parent=1 // pred_region
      %s118 = ssub.s32 16, 16
      %119 = vsyncadd [#allocation15], %s118
      %s121 = sshll.u32 [#allocation14], 4
      %s122 = int_to_ptr.vmem [resolvable:$true] %s121
      %124 = dma.hbm_to_vmem [thread:$0]  %s10, 16, %s122, [#allocation15]
    $region45: #{autoencoder_forward.1} parent=1 // pred_fallthru
      _
    // Predicated region
    $region46: #{autoencoder_forward.1} parent=1 // pred_check
      _
    $region47: #{autoencoder_forward.1} parent=1 // pred_check_branch
      %126 = sbr.rel (0) target = $region49
    $region48: #{autoencoder_forward.1} parent=1 // pred_region
      %s128 = ssub.s32 1024, 1024
      %129 = vsyncadd [#allocation15], %s128
      %s130 = sshll.u32 [#allocation16], 4
      %s131 = int_to_ptr.vmem [resolvable:$true] %s130
      %136 = dma.hbm_to_vmem [thread:$0]  %s11, 1024, %s131, [#allocation15], 64, 64, 4
    $region49: #{autoencoder_forward.1} parent=1 // pred_fallthru
      _
    // Predicated region
    $region50: #{autoencoder_forward.1} parent=1 // pred_check
      _
    $region51: #{autoencoder_forward.1} parent=1 // pred_check_branch
      %138 = sbr.rel (0) target = $region53
    $region52: #{autoencoder_forward.1} parent=1 // pred_region
      %s140 = ssub.s32 16, 16
      %141 = vsyncadd [#allocation18], %s140
      %s143 = sshll.u32 [#allocation17], 4
      %s144 = int_to_ptr.vmem [resolvable:$true] %s143
      %146 = dma.hbm_to_vmem [thread:$0]  %s12, 16, %s144, [#allocation18]
    $region53: #{autoencoder_forward.1} parent=1 // pred_fallthru
      _
    // Predicated region
    $region54: #{autoencoder_forward.1} parent=1 // pred_check
      _
    $region55: #{autoencoder_forward.1} parent=1 // pred_check_branch
      %148 = sbr.rel (0) target = $region57
    $region56: #{autoencoder_forward.1} parent=1 // pred_region
      _
    $region57: #{autoencoder_forward.1} parent=1 // pred_fallthru
      _
    // Predicated region
    $region58: #{autoencoder_forward.1} parent=1 // pred_check
      _
    $region59: #{autoencoder_forward.1} parent=1 // pred_check_branch
      %150 = sbr.rel (0) target = $region61
    $region60: #{autoencoder_forward.1} parent=1 // pred_region
      _
    $region61: #{autoencoder_forward.1} parent=1 // pred_fallthru
      _
    // Predicated region
    $region62: #{autoencoder_forward.1} parent=1 // pred_check
      _
    $region63: #{autoencoder_forward.1} parent=1 // pred_check_branch
      %152 = sbr.rel (0) target = $region65
    $region64: #{autoencoder_forward.1} parent=1 // pred_region
      %s154 = ssub.s32 7168, 7168
      %155 = vsyncadd [#allocation18], %s154
      %s156 = sshll.u32 [#allocation19], 4
      %s157 = int_to_ptr.vmem [resolvable:$true] %s156
      %162 = dma.hbm_to_vmem [thread:$0]  %s15, 7168, %s157, [#allocation18], 448, 448, 28
    $region65: #{autoencoder_forward.1} parent=1 // pred_fallthru
      _
    // Predicated region
    $region66: #{autoencoder_forward.1} parent=1 // pred_check
      _
    $region67: #{autoencoder_forward.1} parent=1 // pred_check_branch
      %164 = sbr.rel (0) target = $region69
    $region68: #{autoencoder_forward.1} parent=1 // pred_region
      _
    $region69: #{autoencoder_forward.1} parent=1 // pred_fallthru
      _
    // Predicated region
    $region70: #{autoencoder_forward.1} parent=1 // pred_check
      _
    $region71: #{autoencoder_forward.1} parent=1 // pred_check_branch
      %166 = sbr.rel (0) target = $region73
    $region72: #{autoencoder_forward.1} parent=1 // pred_region
      %167 = dma.done [#allocation3], 6272
    $region73: #{autoencoder_forward.1} parent=1 // pred_fallthru
      _
    // Predicated region
    $region74: #{autoencoder_forward.1} parent=1 // pred_check
      _
    $region75: #{autoencoder_forward.1} parent=1 // pred_check_branch
      %169 = sbr.rel (0) target = $region77
    $region76: #{autoencoder_forward.1} parent=1 // pred_region
      %170 = dma.done [#allocation6], 16
    $region77: #{autoencoder_forward.1} parent=1 // pred_fallthru
      _
    // Predicated region
    $region78: #{autoencoder_forward.1} parent=1 // pred_check
      _
    $region79: #{autoencoder_forward.1} parent=1 // pred_check_branch
      %172 = sbr.rel (0) target = $region81
    $region80: #{autoencoder_forward.1} parent=1 // pred_region
      %173 = dma.done [#allocation6], 1024
    $region81: #{autoencoder_forward.1} parent=1 // pred_fallthru
      _
    // Predicated region
    $region82: #{autoencoder_forward.1} parent=1 // pred_check
      _
    $region83: #{autoencoder_forward.1} parent=1 // pred_check_branch
      %175 = sbr.rel (0) target = $region85
    $region84: #{autoencoder_forward.1} parent=1 // pred_region
      %176 = dma.done [#allocation9], 16
    $region85: #{autoencoder_forward.1} parent=1 // pred_fallthru
      _
    // Predicated region
    $region86: #{autoencoder_forward.1} parent=1 // pred_check
      _
    $region87: #{autoencoder_forward.1} parent=1 // pred_check_branch
      %178 = sbr.rel (0) target = $region89
    $region88: #{autoencoder_forward.1} parent=1 // pred_region
      %179 = dma.done [#allocation9], 1024
    $region89: #{autoencoder_forward.1} parent=1 // pred_fallthru
      _
    // Predicated region
    $region90: #{autoencoder_forward.1} parent=1 // pred_check
      _
    $region91: #{autoencoder_forward.1} parent=1 // pred_check_branch
      %181 = sbr.rel (0) target = $region93
    $region92: #{autoencoder_forward.1} parent=1 // pred_region
      %182 = dma.done [#allocation12], 16
    $region93: #{autoencoder_forward.1} parent=1 // pred_fallthru
      _
    // Predicated region
    $region94: #{autoencoder_forward.1} parent=1 // pred_check
      _
    $region95: #{autoencoder_forward.1} parent=1 // pred_check_branch
      %184 = sbr.rel (0) target = $region97
    $region96: #{autoencoder_forward.1} parent=1 // pred_region
      %185 = dma.done [#allocation12], 1024
    $region97: #{autoencoder_forward.1} parent=1 // pred_fallthru
      _
    // Predicated region
    $region98: #{autoencoder_forward.1} parent=1 // pred_check
      _
    $region99: #{autoencoder_forward.1} parent=1 // pred_check_branch
      %187 = sbr.rel (0) target = $region101
    $region100: #{autoencoder_forward.1} parent=1 // pred_region
      %188 = dma.done [#allocation15], 16
    $region101: #{autoencoder_forward.1} parent=1 // pred_fallthru
      _
    // Predicated region
    $region102: #{autoencoder_forward.1} parent=1 // pred_check
      _
    $region103: #{autoencoder_forward.1} parent=1 // pred_check_branch
      %190 = sbr.rel (0) target = $region105
    $region104: #{autoencoder_forward.1} parent=1 // pred_region
      %191 = dma.done [#allocation15], 1024
    $region105: #{autoencoder_forward.1} parent=1 // pred_fallthru
      _
    // Predicated region
    $region106: #{autoencoder_forward.1} parent=1 // pred_check
      _
    $region107: #{autoencoder_forward.1} parent=1 // pred_check_branch
      %193 = sbr.rel (0) target = $region109
    $region108: #{autoencoder_forward.1} parent=1 // pred_region
      %194 = dma.done [#allocation18], 16
    $region109: #{autoencoder_forward.1} parent=1 // pred_fallthru
      _
    // Predicated region
    $region110: #{autoencoder_forward.1} parent=1 // pred_check
      _
    $region111: #{autoencoder_forward.1} parent=1 // pred_check_branch
      %196 = sbr.rel (0) target = $region113
    $region112: #{autoencoder_forward.1} parent=1 // pred_region
      %197 = dma.done [#allocation18], 7168
    $region113: #{autoencoder_forward.1} parent=1 // pred_fallthru
      _
    %v199 = vld [vmem:[%s0] sm:$0xff]
    %v200 = vld [vmem:[%s0 + $0x8] sm:$0xff]
    %v201 = vld [vmem:[%s0 + $0x10] sm:$0xff]
    %v202 = vld [vmem:[%s0 + $0x18] sm:$0xf]
    %v203 = vld [vmem:[#allocation2] sm:$0xf]
    %v204 = vld [vmem:[#allocation2 + $0x4] sm:$0xf]
    %v205 = vld [vmem:[#allocation2 + $0x8] sm:$0xf]
    %v206 = vld [vmem:[#allocation2 + $0xc] sm:$0xf]
    %v207 = vld [vmem:[#allocation2 + $0x10] sm:$0xf]
    %v208 = vld [vmem:[#allocation2 + $0x14] sm:$0xf]
    %v209 = vld [vmem:[#allocation2 + $0x18] sm:$0xf]
    %v210 = vld [vmem:[#allocation2 + $0x1c] sm:$0xf]
    %v211 = vld [vmem:[#allocation2 + $0x20] sm:$0xf]
    %v212 = vld [vmem:[#allocation2 + $0x24] sm:$0xf]
    %v213 = vld [vmem:[#allocation2 + $0x28] sm:$0xf]
    %v214 = vld [vmem:[#allocation2 + $0x2c] sm:$0xf]
    %v215 = vld [vmem:[#allocation2 + $0x30] sm:$0xf]
    %v216 = vld [vmem:[#allocation2 + $0x34] sm:$0xf]
    %v217 = vld [vmem:[#allocation2 + $0x38] sm:$0xf]
    %v218 = vld [vmem:[#allocation2 + $0x3c] sm:$0xf]
    %v219 = vld [vmem:[#allocation2 + $0x40] sm:$0xf]
    %v220 = vld [vmem:[#allocation2 + $0x44] sm:$0xf]
    %v221 = vld [vmem:[#allocation2 + $0x48] sm:$0xf]
    %v222 = vld [vmem:[#allocation2 + $0x4c] sm:$0xf]
    %v223 = vld [vmem:[#allocation2 + $0x50] sm:$0xf]
    %v224 = vld [vmem:[#allocation2 + $0x54] sm:$0xf]
    %v225 = vld [vmem:[#allocation2 + $0x58] sm:$0xf]
    %v226 = vld [vmem:[#allocation2 + $0x5c] sm:$0xf]
    %v227 = vld [vmem:[#allocation2 + $0x60] sm:$0xf]
    %v228 = vld [vmem:[#allocation2 + $0x64] sm:$0xf]
    %v229 = vld [vmem:[#allocation2 + $0x68] sm:$0xf]
    %v230 = vld [vmem:[#allocation2 + $0x6c] sm:$0xf]
    %v231 = vld [vmem:[#allocation2 + $0x70] sm:$0xf]
    %v232 = vld [vmem:[#allocation2 + $0x74] sm:$0xf]
    %v233 = vld [vmem:[#allocation2 + $0x78] sm:$0xf]
    %v234 = vld [vmem:[#allocation2 + $0x7c] sm:$0xf]
    %v235 = vld [vmem:[#allocation2 + $0x80] sm:$0xf]
    %v236 = vld [vmem:[#allocation2 + $0x84] sm:$0xf]
    %v237 = vld [vmem:[#allocation2 + $0x88] sm:$0xf]
    %v238 = vld [vmem:[#allocation2 + $0x8c] sm:$0xf]
    %v239 = vld [vmem:[#allocation2 + $0x90] sm:$0xf]
    %v240 = vld [vmem:[#allocation2 + $0x94] sm:$0xf]
    %v241 = vld [vmem:[#allocation2 + $0x98] sm:$0xf]
    %v242 = vld [vmem:[#allocation2 + $0x9c] sm:$0xf]
    %v243 = vld [vmem:[#allocation2 + $0xa0] sm:$0xf]
    %v244 = vld [vmem:[#allocation2 + $0xa4] sm:$0xf]
    %v245 = vld [vmem:[#allocation2 + $0xa8] sm:$0xf]
    %v246 = vld [vmem:[#allocation2 + $0xac] sm:$0xf]
    %v247 = vld [vmem:[#allocation2 + $0xb0] sm:$0xf]
    %v248 = vld [vmem:[#allocation2 + $0xb4] sm:$0xf]
    %v249 = vld [vmem:[#allocation2 + $0xb8] sm:$0xf]
    %v250 = vld [vmem:[#allocation2 + $0xbc] sm:$0xf]
    %v251 = vld [vmem:[#allocation2 + $0xc0] sm:$0xf]
    %v252 = vld [vmem:[#allocation2 + $0xc4] sm:$0xf]
    %v253 = vld [vmem:[#allocation2 + $0xc8] sm:$0xf]
    %v254 = vld [vmem:[#allocation2 + $0xcc] sm:$0xf]
    %v255 = vld [vmem:[#allocation2 + $0xd0] sm:$0xf]
    %v256 = vld [vmem:[#allocation2 + $0xd4] sm:$0xf]
    %v257 = vld [vmem:[#allocation2 + $0xd8] sm:$0xf]
    %v258 = vld [vmem:[#allocation2 + $0xdc] sm:$0xf]
    %v259 = vld [vmem:[#allocation2 + $0xe0] sm:$0xf]
    %v260 = vld [vmem:[#allocation2 + $0xe4] sm:$0xf]
    %v261 = vld [vmem:[#allocation2 + $0xe8] sm:$0xf]
    %v262 = vld [vmem:[#allocation2 + $0xec] sm:$0xf]
    %v263 = vld [vmem:[#allocation2 + $0xf0] sm:$0xf]
    %v264 = vld [vmem:[#allocation2 + $0xf4] sm:$0xf]
    %v265 = vld [vmem:[#allocation2 + $0xf8] sm:$0xf]
    %v266 = vld [vmem:[#allocation2 + $0xfc] sm:$0xf]
    %v267 = vld [vmem:[#allocation2 + $0x100] sm:$0xf]
    %v268 = vld [vmem:[#allocation2 + $0x104] sm:$0xf]
    %v269 = vld [vmem:[#allocation2 + $0x108] sm:$0xf]
    %v270 = vld [vmem:[#allocation2 + $0x10c] sm:$0xf]
    %v271 = vld [vmem:[#allocation2 + $0x110] sm:$0xf]
    %v272 = vld [vmem:[#allocation2 + $0x114] sm:$0xf]
    %v273 = vld [vmem:[#allocation2 + $0x118] sm:$0xf]
    %v274 = vld [vmem:[#allocation2 + $0x11c] sm:$0xf]
    %v275 = vld [vmem:[#allocation2 + $0x120] sm:$0xf]
    %v276 = vld [vmem:[#allocation2 + $0x124] sm:$0xf]
    %v277 = vld [vmem:[#allocation2 + $0x128] sm:$0xf]
    %v278 = vld [vmem:[#allocation2 + $0x12c] sm:$0xf]
    %v279 = vld [vmem:[#allocation2 + $0x130] sm:$0xf]
    %v280 = vld [vmem:[#allocation2 + $0x134] sm:$0xf]
    %v281 = vld [vmem:[#allocation2 + $0x138] sm:$0xf]
    %v282 = vld [vmem:[#allocation2 + $0x13c] sm:$0xf]
    %v283 = vld [vmem:[#allocation2 + $0x140] sm:$0xf]
    %v284 = vld [vmem:[#allocation2 + $0x144] sm:$0xf]
    %v285 = vld [vmem:[#allocation2 + $0x148] sm:$0xf]
    %v286 = vld [vmem:[#allocation2 + $0x14c] sm:$0xf]
    %v287 = vld [vmem:[#allocation2 + $0x150] sm:$0xf]
    %v288 = vld [vmem:[#allocation2 + $0x154] sm:$0xf]
    %v289 = vld [vmem:[#allocation2 + $0x158] sm:$0xf]
    %v290 = vld [vmem:[#allocation2 + $0x15c] sm:$0xf]
    %v291 = vld [vmem:[#allocation2 + $0x160] sm:$0xf]
    %v292 = vld [vmem:[#allocation2 + $0x164] sm:$0xf]
    %v293 = vld [vmem:[#allocation2 + $0x168] sm:$0xf]
    %v294 = vld [vmem:[#allocation2 + $0x16c] sm:$0xf]
    %v295 = vld [vmem:[#allocation2 + $0x170] sm:$0xf]
    %v296 = vld [vmem:[#allocation2 + $0x174] sm:$0xf]
    %v297 = vld [vmem:[#allocation2 + $0x178] sm:$0xf]
    %v298 = vld [vmem:[#allocation2 + $0x17c] sm:$0xf]
    %v299 = vld [vmem:[#allocation2 + $0x180] sm:$0xf]
    %v300 = vld [vmem:[#allocation2 + $0x184] sm:$0xf]
    %v301 = vld [vmem:[%s2] sm:$0x1]
    %v303 = vlaneseq
    %v304 = vshrl.u32 %v303, 7
    %v305 = vsub.s32 0, %v304
    %v306 = vrot.slane %v301, %v305
    %v312 = vunpack.c.l.b16 %v199
    %v313 = vunpack.c.h.b16 %v199
    %v314 = vunpack.c.l.b16 %v200
    %v315 = vunpack.c.h.b16 %v200
    %v316 = vunpack.c.l.b16 %v201
    %v317 = vunpack.c.h.b16 %v201
    %v318 = vunpack.c.l.b16 %v202
    %v319 = vpack.c.b16 %v312, %v312
    %v320 = vpack.c.b16 %v313, %v313
    %v321 = vpack.c.b16 %v314, %v314
    %v322 = vpack.c.b16 %v315, %v315
    %v323 = vpack.c.b16 %v316, %v316
    %v324 = vpack.c.b16 %v317, %v317
    %v325 = vpack.c.b16 %v318, %v318
    %v430 = vunpack.c.l.b16 %v203
    %v431 = vunpack.c.l.b16 %v204
    %v432 = vunpack.c.l.b16 %v205
    %v433 = vunpack.c.l.b16 %v206
    %v434 = vunpack.c.l.b16 %v207
    %v435 = vunpack.c.l.b16 %v208
    %v436 = vunpack.c.l.b16 %v209
    %v437 = vunpack.c.l.b16 %v210
    %v438 = vunpack.c.l.b16 %v211
    %v439 = vunpack.c.l.b16 %v212
    %v440 = vunpack.c.l.b16 %v213
    %v441 = vunpack.c.l.b16 %v214
    %v442 = vunpack.c.l.b16 %v215
    %v443 = vunpack.c.l.b16 %v216
    %v444 = vunpack.c.l.b16 %v217
    %v445 = vunpack.c.l.b16 %v218
    %v446 = vunpack.c.l.b16 %v219
    %v447 = vunpack.c.l.b16 %v220
    %v448 = vunpack.c.l.b16 %v221
    %v449 = vunpack.c.l.b16 %v222
    %v450 = vunpack.c.l.b16 %v223
    %v451 = vunpack.c.l.b16 %v224
    %v452 = vunpack.c.l.b16 %v225
    %v453 = vunpack.c.l.b16 %v226
    %v454 = vunpack.c.l.b16 %v227
    %v455 = vunpack.c.l.b16 %v228
    %v456 = vunpack.c.l.b16 %v229
    %v457 = vunpack.c.l.b16 %v230
    %v458 = vunpack.c.l.b16 %v231
    %v459 = vunpack.c.l.b16 %v232
    %v460 = vunpack.c.l.b16 %v233
    %v461 = vunpack.c.l.b16 %v234
    %v462 = vunpack.c.l.b16 %v235
    %v463 = vunpack.c.l.b16 %v236
    %v464 = vunpack.c.l.b16 %v237
    %v465 = vunpack.c.l.b16 %v238
    %v466 = vunpack.c.l.b16 %v239
    %v467 = vunpack.c.l.b16 %v240
    %v468 = vunpack.c.l.b16 %v241
    %v469 = vunpack.c.l.b16 %v242
    %v470 = vunpack.c.l.b16 %v243
    %v471 = vunpack.c.l.b16 %v244
    %v472 = vunpack.c.l.b16 %v245
    %v473 = vunpack.c.l.b16 %v246
    %v474 = vunpack.c.l.b16 %v247
    %v475 = vunpack.c.l.b16 %v248
    %v476 = vunpack.c.l.b16 %v249
    %v477 = vunpack.c.l.b16 %v250
    %v478 = vunpack.c.l.b16 %v251
    %v479 = vunpack.c.l.b16 %v252
    %v480 = vunpack.c.l.b16 %v253
    %v481 = vunpack.c.l.b16 %v254
    %v482 = vunpack.c.l.b16 %v255
    %v483 = vunpack.c.l.b16 %v256
    %v484 = vunpack.c.l.b16 %v257
    %v485 = vunpack.c.l.b16 %v258
    %v486 = vunpack.c.l.b16 %v259
    %v487 = vunpack.c.l.b16 %v260
    %v488 = vunpack.c.l.b16 %v261
    %v489 = vunpack.c.l.b16 %v262
    %v490 = vunpack.c.l.b16 %v263
    %v491 = vunpack.c.l.b16 %v264
    %v492 = vunpack.c.l.b16 %v265
    %v493 = vunpack.c.l.b16 %v266
    %v494 = vunpack.c.l.b16 %v267
    %v495 = vunpack.c.l.b16 %v268
    %v496 = vunpack.c.l.b16 %v269
    %v497 = vunpack.c.l.b16 %v270
    %v498 = vunpack.c.l.b16 %v271
    %v499 = vunpack.c.l.b16 %v272
    %v500 = vunpack.c.l.b16 %v273
    %v501 = vunpack.c.l.b16 %v274
    %v502 = vunpack.c.l.b16 %v275
    %v503 = vunpack.c.l.b16 %v276
    %v504 = vunpack.c.l.b16 %v277
    %v505 = vunpack.c.l.b16 %v278
    %v506 = vunpack.c.l.b16 %v279
    %v507 = vunpack.c.l.b16 %v280
    %v508 = vunpack.c.l.b16 %v281
    %v509 = vunpack.c.l.b16 %v282
    %v510 = vunpack.c.l.b16 %v283
    %v511 = vunpack.c.l.b16 %v284
    %v512 = vunpack.c.l.b16 %v285
    %v513 = vunpack.c.l.b16 %v286
    %v514 = vunpack.c.l.b16 %v287
    %v515 = vunpack.c.l.b16 %v288
    %v516 = vunpack.c.l.b16 %v289
    %v517 = vunpack.c.l.b16 %v290
    %v518 = vunpack.c.l.b16 %v291
    %v519 = vunpack.c.l.b16 %v292
    %v520 = vunpack.c.l.b16 %v293
    %v521 = vunpack.c.l.b16 %v294
    %v522 = vunpack.c.l.b16 %v295
    %v523 = vunpack.c.l.b16 %v296
    %v524 = vunpack.c.l.b16 %v297
    %v525 = vunpack.c.l.b16 %v298
    %v526 = vunpack.c.l.b16 %v299
    %v527 = vunpack.c.l.b16 %v300
    %v528 = vpack.c.b16 %v431, %v430
    %v529 = vpack.c.b16 %v433, %v432
    %v530 = vpack.c.b16 %v435, %v434
    %v531 = vpack.c.b16 %v437, %v436
    %v532 = vpack.c.b16 %v439, %v438
    %v533 = vpack.c.b16 %v441, %v440
    %v534 = vpack.c.b16 %v443, %v442
    %v535 = vpack.c.b16 %v445, %v444
    %v536 = vpack.c.b16 %v447, %v446
    %v537 = vpack.c.b16 %v449, %v448
    %v538 = vpack.c.b16 %v451, %v450
    %v539 = vpack.c.b16 %v453, %v452
    %v540 = vpack.c.b16 %v455, %v454
    %v541 = vpack.c.b16 %v457, %v456
    %v542 = vpack.c.b16 %v459, %v458
    %v543 = vpack.c.b16 %v461, %v460
    %v544 = vpack.c.b16 %v463, %v462
    %v545 = vpack.c.b16 %v465, %v464
    %v546 = vpack.c.b16 %v467, %v466
    %v547 = vpack.c.b16 %v469, %v468
    %v548 = vpack.c.b16 %v471, %v470
    %v549 = vpack.c.b16 %v473, %v472
    %v550 = vpack.c.b16 %v475, %v474
    %v551 = vpack.c.b16 %v477, %v476
    %v552 = vpack.c.b16 %v479, %v478
    %v553 = vpack.c.b16 %v481, %v480
    %v554 = vpack.c.b16 %v483, %v482
    %v555 = vpack.c.b16 %v485, %v484
    %v556 = vpack.c.b16 %v487, %v486
    %v557 = vpack.c.b16 %v489, %v488
    %v558 = vpack.c.b16 %v491, %v490
    %v559 = vpack.c.b16 %v493, %v492
    %v560 = vpack.c.b16 %v495, %v494
    %v561 = vpack.c.b16 %v497, %v496
    %v562 = vpack.c.b16 %v499, %v498
    %v563 = vpack.c.b16 %v501, %v500
    %v564 = vpack.c.b16 %v503, %v502
    %v565 = vpack.c.b16 %v505, %v504
    %v566 = vpack.c.b16 %v507, %v506
    %v567 = vpack.c.b16 %v509, %v508
    %v568 = vpack.c.b16 %v511, %v510
    %v569 = vpack.c.b16 %v513, %v512
    %v570 = vpack.c.b16 %v515, %v514
    %v571 = vpack.c.b16 %v517, %v516
    %v572 = vpack.c.b16 %v519, %v518
    %v573 = vpack.c.b16 %v521, %v520
    %v574 = vpack.c.b16 %v523, %v522
    %v575 = vpack.c.b16 %v525, %v524
    %v576 = vpack.c.b16 %v527, %v526
    %vm626 = vcmask 130048
    %v628 = vsel %vm626, %v325, 0
    %630 = vmatprep.subr.bf16.mxu0 0
    %631 = vmatpush1.bf16.msra.mxu0 %v528
    %632 = vmatprep.subr.bf16.mxu0 0
    %633 = vmatpush1.bf16.msra.mxu0 %v529
    %634 = vmatprep.subr.bf16.mxu0 0
    %635 = vmatpush1.bf16.msra.mxu0 %v530
    %636 = vmatprep.subr.bf16.mxu0 0
    %637 = vmatpush1.bf16.msra.mxu0 %v531
    %638 = vmatprep.subr.bf16.mxu0 0
    %639 = vmatpush1.bf16.msra.mxu0 %v532
    %640 = vmatprep.subr.bf16.mxu0 0
    %641 = vmatpush1.bf16.msra.mxu0 %v533
    %642 = vmatprep.subr.bf16.mxu0 0
    %643 = vmatpush1.bf16.msra.mxu0 %v534
    %644 = vmatprep.subr.bf16.mxu0 0
    %645 = vmatpush1.bf16.msra.mxu0 %v535
    %646 = vmatprep.subr.bf16.mxu0 0
    %647 = vmatpush1.bf16.msra.mxu0 %v536
    %648 = vmatprep.subr.bf16.mxu0 0
    %649 = vmatpush1.bf16.msra.mxu0 %v537
    %650 = vmatprep.subr.bf16.mxu0 0
    %651 = vmatpush1.bf16.msra.mxu0 %v538
    %652 = vmatprep.subr.bf16.mxu0 0
    %653 = vmatpush1.bf16.msra.mxu0 %v539
    %654 = vmatprep.subr.bf16.mxu0 0
    %655 = vmatpush1.bf16.msra.mxu0 %v540
    %656 = vmatprep.subr.bf16.mxu0 0
    %657 = vmatpush1.bf16.msra.mxu0 %v541
    %658 = vmatprep.subr.bf16.mxu0 0
    %659 = vmatpush1.bf16.msra.mxu0 %v542
    %660 = vmatprep.subr.bf16.mxu0 0
    %661 = vmatpush1.bf16.msra.mxu0 %v543
    %662 = vmatprep.mubr.bf16.mxu0 %v320
    %663 = vmatmul.mubr.bf16.gmra.mrb[0].mxu0 %v319
    %v664 = vpop.f32.mrb[0].mxu0
    %v665 = vadd.f32 %v306, %v664
    %v666 = vpop.f32.mrb[0].mxu0
    %v667 = vpop.f32.mrb[0].mxu0
    %v668 = vpop.f32.mrb[0].mxu0
    %669 = vdwg.mxu0
    %670 = vmatprep.subr.bf16.mxu0 0
    %671 = vmatpush1.bf16.msra.mxu0 %v544
    %672 = vmatprep.subr.bf16.mxu0 0
    %673 = vmatpush1.bf16.msra.mxu0 %v545
    %674 = vmatprep.subr.bf16.mxu0 0
    %675 = vmatpush1.bf16.msra.mxu0 %v546
    %676 = vmatprep.subr.bf16.mxu0 0
    %677 = vmatpush1.bf16.msra.mxu0 %v547
    %678 = vmatprep.subr.bf16.mxu0 0
    %679 = vmatpush1.bf16.msra.mxu0 %v548
    %680 = vmatprep.subr.bf16.mxu0 0
    %681 = vmatpush1.bf16.msra.mxu0 %v549
    %682 = vmatprep.subr.bf16.mxu0 0
    %683 = vmatpush1.bf16.msra.mxu0 %v550
    %684 = vmatprep.subr.bf16.mxu0 0
    %685 = vmatpush1.bf16.msra.mxu0 %v551
    %686 = vmatprep.subr.bf16.mxu0 0
    %687 = vmatpush1.bf16.msra.mxu0 %v552
    %688 = vmatprep.subr.bf16.mxu0 0
    %689 = vmatpush1.bf16.msra.mxu0 %v553
    %690 = vmatprep.subr.bf16.mxu0 0
    %691 = vmatpush1.bf16.msra.mxu0 %v554
    %692 = vmatprep.subr.bf16.mxu0 0
    %693 = vmatpush1.bf16.msra.mxu0 %v555
    %694 = vmatprep.subr.bf16.mxu0 0
    %695 = vmatpush1.bf16.msra.mxu0 %v556
    %696 = vmatprep.subr.bf16.mxu0 0
    %697 = vmatpush1.bf16.msra.mxu0 %v557
    %698 = vmatprep.subr.bf16.mxu0 0
    %699 = vmatpush1.bf16.msra.mxu0 %v558
    %700 = vmatprep.subr.bf16.mxu0 0
    %701 = vmatpush1.bf16.msra.mxu0 %v559
    %702 = vmatprep.mubr.bf16.mxu0 %v322
    %703 = vmatmul.mubr.bf16.gmra.mrb[0].mxu0 %v321
    %v704 = vpop.f32.mrb[0].mxu0
    %v705 = vadd.f32 %v665, %v704
    %v706 = vpop.f32.mrb[0].mxu0
    %v707 = vpop.f32.mrb[0].mxu0
    %v708 = vpop.f32.mrb[0].mxu0
    %709 = vdwg.mxu0
    %710 = vmatprep.subr.bf16.mxu0 0
    %711 = vmatpush1.bf16.msra.mxu0 %v560
    %712 = vmatprep.subr.bf16.mxu0 0
    %713 = vmatpush1.bf16.msra.mxu0 %v561
    %714 = vmatprep.subr.bf16.mxu0 0
    %715 = vmatpush1.bf16.msra.mxu0 %v562
    %716 = vmatprep.subr.bf16.mxu0 0
    %717 = vmatpush1.bf16.msra.mxu0 %v563
    %718 = vmatprep.subr.bf16.mxu0 0
    %719 = vmatpush1.bf16.msra.mxu0 %v564
    %720 = vmatprep.subr.bf16.mxu0 0
    %721 = vmatpush1.bf16.msra.mxu0 %v565
    %722 = vmatprep.subr.bf16.mxu0 0
    %723 = vmatpush1.bf16.msra.mxu0 %v566
    %724 = vmatprep.subr.bf16.mxu0 0
    %725 = vmatpush1.bf16.msra.mxu0 %v567
    %726 = vmatprep.subr.bf16.mxu0 0
    %727 = vmatpush1.bf16.msra.mxu0 %v568
    %728 = vmatprep.subr.bf16.mxu0 0
    %729 = vmatpush1.bf16.msra.mxu0 %v569
    %730 = vmatprep.subr.bf16.mxu0 0
    %731 = vmatpush1.bf16.msra.mxu0 %v570
    %732 = vmatprep.subr.bf16.mxu0 0
    %733 = vmatpush1.bf16.msra.mxu0 %v571
    %734 = vmatprep.subr.bf16.mxu0 0
    %735 = vmatpush1.bf16.msra.mxu0 %v572
    %736 = vmatprep.subr.bf16.mxu0 0
    %737 = vmatpush1.bf16.msra.mxu0 %v573
    %738 = vmatprep.subr.bf16.mxu0 0
    %739 = vmatpush1.bf16.msra.mxu0 %v574
    %740 = vmatprep.subr.bf16.mxu0 0
    %741 = vmatpush1.bf16.msra.mxu0 %v575
    %742 = vmatprep.mubr.bf16.mxu0 %v324
    %743 = vmatmul.mubr.bf16.gmra.mrb[0].mxu0 %v323
    %v744 = vpop.f32.mrb[0].mxu0
    %v745 = vadd.f32 %v705, %v744
    %v746 = vpop.f32.mrb[0].mxu0
    %v747 = vpop.f32.mrb[0].mxu0
    %v748 = vpop.f32.mrb[0].mxu0
    %749 = vdwg.mxu0
    %750 = vmatprep.subr.bf16.mxu0 0
    %751 = vmatpush1.bf16.msra.mxu0 %v576
    %752 = vmatprep.subr.bf16.mxu0 0
    %753 = vmatpush1.bf16.msra.mxu0 0
    %754 = vmatprep.subr.bf16.mxu0 0
    %755 = vmatpush1.bf16.msra.mxu0 0
    %756 = vmatprep.subr.bf16.mxu0 0
    %757 = vmatpush1.bf16.msra.mxu0 0
    %758 = vmatprep.subr.bf16.mxu0 0
    %759 = vmatpush1.bf16.msra.mxu0 0
    %760 = vmatprep.subr.bf16.mxu0 0
    %761 = vmatpush1.bf16.msra.mxu0 0
    %762 = vmatprep.subr.bf16.mxu0 0
    %763 = vmatpush1.bf16.msra.mxu0 0
    %764 = vmatprep.subr.bf16.mxu0 0
    %765 = vmatpush1.bf16.msra.mxu0 0
    %766 = vmatprep.subr.bf16.mxu0 0
    %767 = vmatpush1.bf16.msra.mxu0 0
    %768 = vmatprep.subr.bf16.mxu0 0
    %769 = vmatpush1.bf16.msra.mxu0 0
    %770 = vmatprep.subr.bf16.mxu0 0
    %771 = vmatpush1.bf16.msra.mxu0 0
    %772 = vmatprep.subr.bf16.mxu0 0
    %773 = vmatpush1.bf16.msra.mxu0 0
    %774 = vmatprep.subr.bf16.mxu0 0
    %775 = vmatpush1.bf16.msra.mxu0 0
    %776 = vmatprep.subr.bf16.mxu0 0
    %777 = vmatpush1.bf16.msra.mxu0 0
    %778 = vmatprep.subr.bf16.mxu0 0
    %779 = vmatpush1.bf16.msra.mxu0 0
    %780 = vmatprep.subr.bf16.mxu0 0
    %781 = vmatpush1.bf16.msra.mxu0 0
    %782 = vmatprep.mubr.bf16.mxu0 0
    %783 = vmatmul.mubr.bf16.gmra.mrb[0].mxu0 %v628
    %v784 = vpop.f32.mrb[0].mxu0
    %v785 = vadd.f32 %v745, %v784
    %v786 = vpop.f32.mrb[0].mxu0
    %v787 = vpop.f32.mrb[0].mxu0
    %v788 = vpop.f32.mrb[0].mxu0
    %789 = vdwg.mxu0
    %v790 = vtanh.pop %v785
    %v791 = vpack.c.bf16 %v790, %v790
    %v792 = vld [vmem:[%s3] sm:$0xf]
    %v793 = vld [vmem:[%s3 + $0x4] sm:$0xf]
    %v794 = vld [vmem:[%s3 + $0x8] sm:$0xf]
    %v795 = vld [vmem:[%s3 + $0xc] sm:$0xf]
    %v796 = vld [vmem:[%s3 + $0x10] sm:$0xf]
    %v797 = vld [vmem:[%s3 + $0x14] sm:$0xf]
    %v798 = vld [vmem:[%s3 + $0x18] sm:$0xf]
    %v799 = vld [vmem:[%s3 + $0x1c] sm:$0xf]
    %v800 = vld [vmem:[%s3 + $0x20] sm:$0xf]
    %v801 = vld [vmem:[%s3 + $0x24] sm:$0xf]
    %v802 = vld [vmem:[%s3 + $0x28] sm:$0xf]
    %v803 = vld [vmem:[%s3 + $0x2c] sm:$0xf]
    %v804 = vld [vmem:[%s3 + $0x30] sm:$0xf]
    %v805 = vld [vmem:[%s3 + $0x34] sm:$0xf]
    %v806 = vld [vmem:[%s3 + $0x38] sm:$0xf]
    %v807 = vld [vmem:[%s3 + $0x3c] sm:$0xf]
    %v808 = vld [vmem:[#allocation5] sm:$0x1]
    %v810 = vlaneseq
    %v811 = vshrl.u32 %v810, 7
    %v812 = vsub.s32 0, %v811
    %v813 = vrot.slane %v808, %v812
    %v831 = vunpack.c.l.b16 %v792
    %v832 = vunpack.c.l.b16 %v793
    %v833 = vunpack.c.l.b16 %v794
    %v834 = vunpack.c.l.b16 %v795
    %v835 = vunpack.c.l.b16 %v796
    %v836 = vunpack.c.l.b16 %v797
    %v837 = vunpack.c.l.b16 %v798
    %v838 = vunpack.c.l.b16 %v799
    %v839 = vunpack.c.l.b16 %v800
    %v840 = vunpack.c.l.b16 %v801
    %v841 = vunpack.c.l.b16 %v802
    %v842 = vunpack.c.l.b16 %v803
    %v843 = vunpack.c.l.b16 %v804
    %v844 = vunpack.c.l.b16 %v805
    %v845 = vunpack.c.l.b16 %v806
    %v846 = vunpack.c.l.b16 %v807
    %v847 = vpack.c.b16 %v832, %v831
    %v848 = vpack.c.b16 %v834, %v833
    %v849 = vpack.c.b16 %v836, %v835
    %v850 = vpack.c.b16 %v838, %v837
    %v851 = vpack.c.b16 %v840, %v839
    %v852 = vpack.c.b16 %v842, %v841
    %v853 = vpack.c.b16 %v844, %v843
    %v854 = vpack.c.b16 %v846, %v845
    %863 = vmatprep.subr.bf16.mxu0 0
    %864 = vmatpush1.bf16.msra.mxu0 %v847
    %865 = vmatprep.subr.bf16.mxu0 0
    %866 = vmatpush1.bf16.msra.mxu0 %v848
    %867 = vmatprep.subr.bf16.mxu0 0
    %868 = vmatpush1.bf16.msra.mxu0 %v849
    %869 = vmatprep.subr.bf16.mxu0 0
    %870 = vmatpush1.bf16.msra.mxu0 %v850
    %871 = vmatprep.subr.bf16.mxu0 0
    %872 = vmatpush1.bf16.msra.mxu0 %v851
    %873 = vmatprep.subr.bf16.mxu0 0
    %874 = vmatpush1.bf16.msra.mxu0 %v852
    %875 = vmatprep.subr.bf16.mxu0 0
    %876 = vmatpush1.bf16.msra.mxu0 %v853
    %877 = vmatprep.subr.bf16.mxu0 0
    %878 = vmatpush1.bf16.msra.mxu0 %v854
    %879 = vmatprep.subr.bf16.mxu0 0
    %880 = vmatpush1.bf16.msra.mxu0 0
    %881 = vmatprep.subr.bf16.mxu0 0
    %882 = vmatpush1.bf16.msra.mxu0 0
    %883 = vmatprep.subr.bf16.mxu0 0
    %884 = vmatpush1.bf16.msra.mxu0 0
    %885 = vmatprep.subr.bf16.mxu0 0
    %886 = vmatpush1.bf16.msra.mxu0 0
    %887 = vmatprep.subr.bf16.mxu0 0
    %888 = vmatpush1.bf16.msra.mxu0 0
    %889 = vmatprep.subr.bf16.mxu0 0
    %890 = vmatpush1.bf16.msra.mxu0 0
    %891 = vmatprep.subr.bf16.mxu0 0
    %892 = vmatpush1.bf16.msra.mxu0 0
    %893 = vmatprep.subr.bf16.mxu0 0
    %894 = vmatpush1.bf16.msra.mxu0 0
    %895 = vmatprep.mubr.bf16.mxu0 0
    %896 = vmatmul.mubr.bf16.gmra.mrb[0].mxu0 %v791
    %v897 = vpop.f32.mrb[0].mxu0
    %v898 = vadd.f32 %v813, %v897
    %v899 = vpop.f32.mrb[0].mxu0
    %v900 = vpop.f32.mrb[0].mxu0
    %v901 = vpop.f32.mrb[0].mxu0
    %902 = vdwg.mxu0
    %v903 = vtanh.pop %v898
    %v904 = vpack.c.bf16 %v903, %v903
    %v905 = vld [vmem:[#allocation7] sm:$0xf]
    %v906 = vld [vmem:[#allocation7 + $0x4] sm:$0xf]
    %v907 = vld [vmem:[#allocation7 + $0x8] sm:$0xf]
    %v908 = vld [vmem:[#allocation7 + $0xc] sm:$0xf]
    %v909 = vld [vmem:[#allocation7 + $0x10] sm:$0xf]
    %v910 = vld [vmem:[#allocation7 + $0x14] sm:$0xf]
    %v911 = vld [vmem:[#allocation7 + $0x18] sm:$0xf]
    %v912 = vld [vmem:[#allocation7 + $0x1c] sm:$0xf]
    %v913 = vld [vmem:[#allocation7 + $0x20] sm:$0xf]
    %v914 = vld [vmem:[#allocation7 + $0x24] sm:$0xf]
    %v915 = vld [vmem:[#allocation7 + $0x28] sm:$0xf]
    %v916 = vld [vmem:[#allocation7 + $0x2c] sm:$0xf]
    %v917 = vld [vmem:[#allocation7 + $0x30] sm:$0xf]
    %v918 = vld [vmem:[#allocation7 + $0x34] sm:$0xf]
    %v919 = vld [vmem:[#allocation7 + $0x38] sm:$0xf]
    %v920 = vld [vmem:[#allocation7 + $0x3c] sm:$0xf]
    %v921 = vld [vmem:[#allocation8] sm:$0x1]
    %v923 = vlaneseq
    %v924 = vshrl.u32 %v923, 7
    %v925 = vsub.s32 0, %v924
    %v926 = vrot.slane %v921, %v925
    %v944 = vunpack.c.l.b16 %v905
    %v945 = vunpack.c.l.b16 %v906
    %v946 = vunpack.c.l.b16 %v907
    %v947 = vunpack.c.l.b16 %v908
    %v948 = vunpack.c.l.b16 %v909
    %v949 = vunpack.c.l.b16 %v910
    %v950 = vunpack.c.l.b16 %v911
    %v951 = vunpack.c.l.b16 %v912
    %v952 = vunpack.c.l.b16 %v913
    %v953 = vunpack.c.l.b16 %v914
    %v954 = vunpack.c.l.b16 %v915
    %v955 = vunpack.c.l.b16 %v916
    %v956 = vunpack.c.l.b16 %v917
    %v957 = vunpack.c.l.b16 %v918
    %v958 = vunpack.c.l.b16 %v919
    %v959 = vunpack.c.l.b16 %v920
    %v960 = vpack.c.b16 %v945, %v944
    %v961 = vpack.c.b16 %v947, %v946
    %v962 = vpack.c.b16 %v949, %v948
    %v963 = vpack.c.b16 %v951, %v950
    %v964 = vpack.c.b16 %v953, %v952
    %v965 = vpack.c.b16 %v955, %v954
    %v966 = vpack.c.b16 %v957, %v956
    %v967 = vpack.c.b16 %v959, %v958
    %976 = vmatprep.subr.bf16.mxu0 0
    %977 = vmatpush1.bf16.msra.mxu0 %v960
    %978 = vmatprep.subr.bf16.mxu0 0
    %979 = vmatpush1.bf16.msra.mxu0 %v961
    %980 = vmatprep.subr.bf16.mxu0 0
    %981 = vmatpush1.bf16.msra.mxu0 %v962
    %982 = vmatprep.subr.bf16.mxu0 0
    %983 = vmatpush1.bf16.msra.mxu0 %v963
    %984 = vmatprep.subr.bf16.mxu0 0
    %985 = vmatpush1.bf16.msra.mxu0 %v964
    %986 = vmatprep.subr.bf16.mxu0 0
    %987 = vmatpush1.bf16.msra.mxu0 %v965
    %988 = vmatprep.subr.bf16.mxu0 0
    %989 = vmatpush1.bf16.msra.mxu0 %v966
    %990 = vmatprep.subr.bf16.mxu0 0
    %991 = vmatpush1.bf16.msra.mxu0 %v967
    %992 = vmatprep.subr.bf16.mxu0 0
    %993 = vmatpush1.bf16.msra.mxu0 0
    %994 = vmatprep.subr.bf16.mxu0 0
    %995 = vmatpush1.bf16.msra.mxu0 0
    %996 = vmatprep.subr.bf16.mxu0 0
    %997 = vmatpush1.bf16.msra.mxu0 0
    %998 = vmatprep.subr.bf16.mxu0 0
    %999 = vmatpush1.bf16.msra.mxu0 0
    %1000 = vmatprep.subr.bf16.mxu0 0
    %1001 = vmatpush1.bf16.msra.mxu0 0
    %1002 = vmatprep.subr.bf16.mxu0 0
    %1003 = vmatpush1.bf16.msra.mxu0 0
    %1004 = vmatprep.subr.bf16.mxu0 0
    %1005 = vmatpush1.bf16.msra.mxu0 0
    %1006 = vmatprep.subr.bf16.mxu0 0
    %1007 = vmatpush1.bf16.msra.mxu0 0
    %1008 = vmatprep.mubr.bf16.mxu0 0
    %1009 = vmatmul.mubr.bf16.gmra.mrb[0].mxu0 %v904
    %v1010 = vpop.f32.mrb[0].mxu0
    %v1011 = vadd.f32 %v926, %v1010
    %v1012 = vpop.f32.mrb[0].mxu0
    %v1013 = vpop.f32.mrb[0].mxu0
    %v1014 = vpop.f32.mrb[0].mxu0
    %1015 = vdwg.mxu0
    %v1016 = vtanh.pop %v1011
    %v1017 = vpack.c.bf16 %v1016, %v1016
    %v1018 = vld [vmem:[#allocation10] sm:$0xf]
    %v1019 = vld [vmem:[#allocation10 + $0x4] sm:$0xf]
    %v1020 = vld [vmem:[#allocation10 + $0x8] sm:$0xf]
    %v1021 = vld [vmem:[#allocation10 + $0xc] sm:$0xf]
    %v1022 = vld [vmem:[#allocation10 + $0x10] sm:$0xf]
    %v1023 = vld [vmem:[#allocation10 + $0x14] sm:$0xf]
    %v1024 = vld [vmem:[#allocation10 + $0x18] sm:$0xf]
    %v1025 = vld [vmem:[#allocation10 + $0x1c] sm:$0xf]
    %v1026 = vld [vmem:[#allocation10 + $0x20] sm:$0xf]
    %v1027 = vld [vmem:[#allocation10 + $0x24] sm:$0xf]
    %v1028 = vld [vmem:[#allocation10 + $0x28] sm:$0xf]
    %v1029 = vld [vmem:[#allocation10 + $0x2c] sm:$0xf]
    %v1030 = vld [vmem:[#allocation10 + $0x30] sm:$0xf]
    %v1031 = vld [vmem:[#allocation10 + $0x34] sm:$0xf]
    %v1032 = vld [vmem:[#allocation10 + $0x38] sm:$0xf]
    %v1033 = vld [vmem:[#allocation10 + $0x3c] sm:$0xf]
    %v1034 = vld [vmem:[#allocation11] sm:$0x1]
    %v1036 = vlaneseq
    %v1037 = vshrl.u32 %v1036, 7
    %v1038 = vsub.s32 0, %v1037
    %v1039 = vrot.slane %v1034, %v1038
    %v1057 = vunpack.c.l.b16 %v1018
    %v1058 = vunpack.c.l.b16 %v1019
    %v1059 = vunpack.c.l.b16 %v1020
    %v1060 = vunpack.c.l.b16 %v1021
    %v1061 = vunpack.c.l.b16 %v1022
    %v1062 = vunpack.c.l.b16 %v1023
    %v1063 = vunpack.c.l.b16 %v1024
    %v1064 = vunpack.c.l.b16 %v1025
    %v1065 = vunpack.c.l.b16 %v1026
    %v1066 = vunpack.c.l.b16 %v1027
    %v1067 = vunpack.c.l.b16 %v1028
    %v1068 = vunpack.c.l.b16 %v1029
    %v1069 = vunpack.c.l.b16 %v1030
    %v1070 = vunpack.c.l.b16 %v1031
    %v1071 = vunpack.c.l.b16 %v1032
    %v1072 = vunpack.c.l.b16 %v1033
    %v1073 = vpack.c.b16 %v1058, %v1057
    %v1074 = vpack.c.b16 %v1060, %v1059
    %v1075 = vpack.c.b16 %v1062, %v1061
    %v1076 = vpack.c.b16 %v1064, %v1063
    %v1077 = vpack.c.b16 %v1066, %v1065
    %v1078 = vpack.c.b16 %v1068, %v1067
    %v1079 = vpack.c.b16 %v1070, %v1069
    %v1080 = vpack.c.b16 %v1072, %v1071
    %1089 = vmatprep.subr.bf16.mxu0 0
    %1090 = vmatpush1.bf16.msra.mxu0 %v1073
    %1091 = vmatprep.subr.bf16.mxu0 0
    %1092 = vmatpush1.bf16.msra.mxu0 %v1074
    %1093 = vmatprep.subr.bf16.mxu0 0
    %1094 = vmatpush1.bf16.msra.mxu0 %v1075
    %1095 = vmatprep.subr.bf16.mxu0 0
    %1096 = vmatpush1.bf16.msra.mxu0 %v1076
    %1097 = vmatprep.subr.bf16.mxu0 0
    %1098 = vmatpush1.bf16.msra.mxu0 %v1077
    %1099 = vmatprep.subr.bf16.mxu0 0
    %1100 = vmatpush1.bf16.msra.mxu0 %v1078
    %1101 = vmatprep.subr.bf16.mxu0 0
    %1102 = vmatpush1.bf16.msra.mxu0 %v1079
    %1103 = vmatprep.subr.bf16.mxu0 0
    %1104 = vmatpush1.bf16.msra.mxu0 %v1080
    %1105 = vmatprep.subr.bf16.mxu0 0
    %1106 = vmatpush1.bf16.msra.mxu0 0
    %1107 = vmatprep.subr.bf16.mxu0 0
    %1108 = vmatpush1.bf16.msra.mxu0 0
    %1109 = vmatprep.subr.bf16.mxu0 0
    %1110 = vmatpush1.bf16.msra.mxu0 0
    %1111 = vmatprep.subr.bf16.mxu0 0
    %1112 = vmatpush1.bf16.msra.mxu0 0
    %1113 = vmatprep.subr.bf16.mxu0 0
    %1114 = vmatpush1.bf16.msra.mxu0 0
    %1115 = vmatprep.subr.bf16.mxu0 0
    %1116 = vmatpush1.bf16.msra.mxu0 0
    %1117 = vmatprep.subr.bf16.mxu0 0
    %1118 = vmatpush1.bf16.msra.mxu0 0
    %1119 = vmatprep.subr.bf16.mxu0 0
    %1120 = vmatpush1.bf16.msra.mxu0 0
    %1121 = vmatprep.mubr.bf16.mxu0 0
    %1122 = vmatmul.mubr.bf16.gmra.mrb[0].mxu0 %v1017
    %v1123 = vpop.f32.mrb[0].mxu0
    %v1124 = vadd.f32 %v1039, %v1123
    %v1125 = vpop.f32.mrb[0].mxu0
    %v1126 = vpop.f32.mrb[0].mxu0
    %v1127 = vpop.f32.mrb[0].mxu0
    %1128 = vdwg.mxu0
    %v1129 = vpack.c.bf16 %v1124, %v1124
    %1130 = vst [vmem:[%s17] sm:$0xff] %v1124
    %v1131 = vld [vmem:[#allocation13] sm:$0xf]
    %v1132 = vld [vmem:[#allocation13 + $0x4] sm:$0xf]
    %v1133 = vld [vmem:[#allocation13 + $0x8] sm:$0xf]
    %v1134 = vld [vmem:[#allocation13 + $0xc] sm:$0xf]
    %v1135 = vld [vmem:[#allocation13 + $0x10] sm:$0xf]
    %v1136 = vld [vmem:[#allocation13 + $0x14] sm:$0xf]
    %v1137 = vld [vmem:[#allocation13 + $0x18] sm:$0xf]
    %v1138 = vld [vmem:[#allocation13 + $0x1c] sm:$0xf]
    %v1139 = vld [vmem:[#allocation13 + $0x20] sm:$0xf]
    %v1140 = vld [vmem:[#allocation13 + $0x24] sm:$0xf]
    %v1141 = vld [vmem:[#allocation13 + $0x28] sm:$0xf]
    %v1142 = vld [vmem:[#allocation13 + $0x2c] sm:$0xf]
    %v1143 = vld [vmem:[#allocation13 + $0x30] sm:$0xf]
    %v1144 = vld [vmem:[#allocation13 + $0x34] sm:$0xf]
    %v1145 = vld [vmem:[#allocation13 + $0x38] sm:$0xf]
    %v1146 = vld [vmem:[#allocation13 + $0x3c] sm:$0xf]
    %v1147 = vld [vmem:[#allocation14] sm:$0x1]
    %v1149 = vlaneseq
    %v1150 = vshrl.u32 %v1149, 7
    %v1151 = vsub.s32 0, %v1150
    %v1152 = vrot.slane %v1147, %v1151
    %v1170 = vunpack.c.l.b16 %v1131
    %v1171 = vunpack.c.l.b16 %v1132
    %v1172 = vunpack.c.l.b16 %v1133
    %v1173 = vunpack.c.l.b16 %v1134
    %v1174 = vunpack.c.l.b16 %v1135
    %v1175 = vunpack.c.l.b16 %v1136
    %v1176 = vunpack.c.l.b16 %v1137
    %v1177 = vunpack.c.l.b16 %v1138
    %v1178 = vunpack.c.l.b16 %v1139
    %v1179 = vunpack.c.l.b16 %v1140
    %v1180 = vunpack.c.l.b16 %v1141
    %v1181 = vunpack.c.l.b16 %v1142
    %v1182 = vunpack.c.l.b16 %v1143
    %v1183 = vunpack.c.l.b16 %v1144
    %v1184 = vunpack.c.l.b16 %v1145
    %v1185 = vunpack.c.l.b16 %v1146
    %v1186 = vpack.c.b16 %v1171, %v1170
    %v1187 = vpack.c.b16 %v1173, %v1172
    %v1188 = vpack.c.b16 %v1175, %v1174
    %v1189 = vpack.c.b16 %v1177, %v1176
    %v1190 = vpack.c.b16 %v1179, %v1178
    %v1191 = vpack.c.b16 %v1181, %v1180
    %v1192 = vpack.c.b16 %v1183, %v1182
    %v1193 = vpack.c.b16 %v1185, %v1184
    %1202 = vmatprep.subr.bf16.mxu0 0
    %1203 = vmatpush1.bf16.msra.mxu0 %v1186
    %1204 = vmatprep.subr.bf16.mxu0 0
    %1205 = vmatpush1.bf16.msra.mxu0 %v1187
    %1206 = vmatprep.subr.bf16.mxu0 0
    %1207 = vmatpush1.bf16.msra.mxu0 %v1188
    %1208 = vmatprep.subr.bf16.mxu0 0
    %1209 = vmatpush1.bf16.msra.mxu0 %v1189
    %1210 = vmatprep.subr.bf16.mxu0 0
    %1211 = vmatpush1.bf16.msra.mxu0 %v1190
    %1212 = vmatprep.subr.bf16.mxu0 0
    %1213 = vmatpush1.bf16.msra.mxu0 %v1191
    %1214 = vmatprep.subr.bf16.mxu0 0
    %1215 = vmatpush1.bf16.msra.mxu0 %v1192
    %1216 = vmatprep.subr.bf16.mxu0 0
    %1217 = vmatpush1.bf16.msra.mxu0 %v1193
    %1218 = vmatprep.subr.bf16.mxu0 0
    %1219 = vmatpush1.bf16.msra.mxu0 0
    %1220 = vmatprep.subr.bf16.mxu0 0
    %1221 = vmatpush1.bf16.msra.mxu0 0
    %1222 = vmatprep.subr.bf16.mxu0 0
    %1223 = vmatpush1.bf16.msra.mxu0 0
    %1224 = vmatprep.subr.bf16.mxu0 0
    %1225 = vmatpush1.bf16.msra.mxu0 0
    %1226 = vmatprep.subr.bf16.mxu0 0
    %1227 = vmatpush1.bf16.msra.mxu0 0
    %1228 = vmatprep.subr.bf16.mxu0 0
    %1229 = vmatpush1.bf16.msra.mxu0 0
    %1230 = vmatprep.subr.bf16.mxu0 0
    %1231 = vmatpush1.bf16.msra.mxu0 0
    %1232 = vmatprep.subr.bf16.mxu0 0
    %1233 = vmatpush1.bf16.msra.mxu0 0
    %1234 = vmatprep.mubr.bf16.mxu0 0
    %1235 = vmatmul.mubr.bf16.gmra.mrb[0].mxu0 %v1129
    %v1236 = vpop.f32.mrb[0].mxu0
    %v1237 = vadd.f32 %v1152, %v1236
    %v1238 = vpop.f32.mrb[0].mxu0
    %v1239 = vpop.f32.mrb[0].mxu0
    %v1240 = vpop.f32.mrb[0].mxu0
    %1241 = vdwg.mxu0
    %v1242 = vtanh.pop %v1237
    %v1243 = vpack.c.bf16 %v1242, %v1242
    %v1244 = vld [vmem:[#allocation16] sm:$0xf]
    %v1245 = vld [vmem:[#allocation16 + $0x4] sm:$0xf]
    %v1246 = vld [vmem:[#allocation16 + $0x8] sm:$0xf]
    %v1247 = vld [vmem:[#allocation16 + $0xc] sm:$0xf]
    %v1248 = vld [vmem:[#allocation16 + $0x10] sm:$0xf]
    %v1249 = vld [vmem:[#allocation16 + $0x14] sm:$0xf]
    %v1250 = vld [vmem:[#allocation16 + $0x18] sm:$0xf]
    %v1251 = vld [vmem:[#allocation16 + $0x1c] sm:$0xf]
    %v1252 = vld [vmem:[#allocation16 + $0x20] sm:$0xf]
    %v1253 = vld [vmem:[#allocation16 + $0x24] sm:$0xf]
    %v1254 = vld [vmem:[#allocation16 + $0x28] sm:$0xf]
    %v1255 = vld [vmem:[#allocation16 + $0x2c] sm:$0xf]
    %v1256 = vld [vmem:[#allocation16 + $0x30] sm:$0xf]
    %v1257 = vld [vmem:[#allocation16 + $0x34] sm:$0xf]
    %v1258 = vld [vmem:[#allocation16 + $0x38] sm:$0xf]
    %v1259 = vld [vmem:[#allocation16 + $0x3c] sm:$0xf]
    %v1260 = vld [vmem:[#allocation17] sm:$0x1]
    %v1262 = vlaneseq
    %v1263 = vshrl.u32 %v1262, 7
    %v1264 = vsub.s32 0, %v1263
    %v1265 = vrot.slane %v1260, %v1264
    %v1283 = vunpack.c.l.b16 %v1244
    %v1284 = vunpack.c.l.b16 %v1245
    %v1285 = vunpack.c.l.b16 %v1246
    %v1286 = vunpack.c.l.b16 %v1247
    %v1287 = vunpack.c.l.b16 %v1248
    %v1288 = vunpack.c.l.b16 %v1249
    %v1289 = vunpack.c.l.b16 %v1250
    %v1290 = vunpack.c.l.b16 %v1251
    %v1291 = vunpack.c.l.b16 %v1252
    %v1292 = vunpack.c.l.b16 %v1253
    %v1293 = vunpack.c.l.b16 %v1254
    %v1294 = vunpack.c.l.b16 %v1255
    %v1295 = vunpack.c.l.b16 %v1256
    %v1296 = vunpack.c.l.b16 %v1257
    %v1297 = vunpack.c.l.b16 %v1258
    %v1298 = vunpack.c.l.b16 %v1259
    %v1299 = vpack.c.b16 %v1284, %v1283
    %v1300 = vpack.c.b16 %v1286, %v1285
    %v1301 = vpack.c.b16 %v1288, %v1287
    %v1302 = vpack.c.b16 %v1290, %v1289
    %v1303 = vpack.c.b16 %v1292, %v1291
    %v1304 = vpack.c.b16 %v1294, %v1293
    %v1305 = vpack.c.b16 %v1296, %v1295
    %v1306 = vpack.c.b16 %v1298, %v1297
    %1315 = vmatprep.subr.bf16.mxu0 0
    %1316 = vmatpush1.bf16.msra.mxu0 %v1299
    %1317 = vmatprep.subr.bf16.mxu0 0
    %1318 = vmatpush1.bf16.msra.mxu0 %v1300
    %1319 = vmatprep.subr.bf16.mxu0 0
    %1320 = vmatpush1.bf16.msra.mxu0 %v1301
    %1321 = vmatprep.subr.bf16.mxu0 0
    %1322 = vmatpush1.bf16.msra.mxu0 %v1302
    %1323 = vmatprep.subr.bf16.mxu0 0
    %1324 = vmatpush1.bf16.msra.mxu0 %v1303
    %1325 = vmatprep.subr.bf16.mxu0 0
    %1326 = vmatpush1.bf16.msra.mxu0 %v1304
    %1327 = vmatprep.subr.bf16.mxu0 0
    %1328 = vmatpush1.bf16.msra.mxu0 %v1305
    %1329 = vmatprep.subr.bf16.mxu0 0
    %1330 = vmatpush1.bf16.msra.mxu0 %v1306
    %1331 = vmatprep.subr.bf16.mxu0 0
    %1332 = vmatpush1.bf16.msra.mxu0 0
    %1333 = vmatprep.subr.bf16.mxu0 0
    %1334 = vmatpush1.bf16.msra.mxu0 0
    %1335 = vmatprep.subr.bf16.mxu0 0
    %1336 = vmatpush1.bf16.msra.mxu0 0
    %1337 = vmatprep.subr.bf16.mxu0 0
    %1338 = vmatpush1.bf16.msra.mxu0 0
    %1339 = vmatprep.subr.bf16.mxu0 0
    %1340 = vmatpush1.bf16.msra.mxu0 0
    %1341 = vmatprep.subr.bf16.mxu0 0
    %1342 = vmatpush1.bf16.msra.mxu0 0
    %1343 = vmatprep.subr.bf16.mxu0 0
    %1344 = vmatpush1.bf16.msra.mxu0 0
    %1345 = vmatprep.subr.bf16.mxu0 0
    %1346 = vmatpush1.bf16.msra.mxu0 0
    %1347 = vmatprep.mubr.bf16.mxu0 0
    %1348 = vmatmul.mubr.bf16.gmra.mrb[0].mxu0 %v1243
    %v1349 = vpop.f32.mrb[0].mxu0
    %v1350 = vadd.f32 %v1265, %v1349
    %v1351 = vpop.f32.mrb[0].mxu0
    %v1352 = vpop.f32.mrb[0].mxu0
    %v1353 = vpop.f32.mrb[0].mxu0
    %1354 = vdwg.mxu0
    %v1355 = vtanh.pop %v1350
    %v1356 = vpack.c.bf16 %v1355, %v1355
    %v1357 = vld [vmem:[%s13] sm:$0xf]
    %v1358 = vld [vmem:[%s13 + $0x4] sm:$0xf]
    %v1359 = vld [vmem:[%s13 + $0x8] sm:$0xf]
    %v1360 = vld [vmem:[%s13 + $0xc] sm:$0xf]
    %v1361 = vld [vmem:[%s13 + $0x10] sm:$0xf]
    %v1362 = vld [vmem:[%s13 + $0x14] sm:$0xf]
    %v1363 = vld [vmem:[%s13 + $0x18] sm:$0xf]
    %v1364 = vld [vmem:[%s13 + $0x1c] sm:$0xf]
    %v1365 = vld [vmem:[%s13 + $0x20] sm:$0xf]
    %v1366 = vld [vmem:[%s13 + $0x24] sm:$0xf]
    %v1367 = vld [vmem:[%s13 + $0x28] sm:$0xf]
    %v1368 = vld [vmem:[%s13 + $0x2c] sm:$0xf]
    %v1369 = vld [vmem:[%s13 + $0x30] sm:$0xf]
    %v1370 = vld [vmem:[%s13 + $0x34] sm:$0xf]
    %v1371 = vld [vmem:[%s13 + $0x38] sm:$0xf]
    %v1372 = vld [vmem:[%s13 + $0x3c] sm:$0xf]
    %v1373 = vld [vmem:[%s14] sm:$0x1]
    %v1375 = vlaneseq
    %v1376 = vshrl.u32 %v1375, 7
    %v1377 = vsub.s32 0, %v1376
    %v1378 = vrot.slane %v1373, %v1377
    %v1396 = vunpack.c.l.b16 %v1357
    %v1397 = vunpack.c.l.b16 %v1358
    %v1398 = vunpack.c.l.b16 %v1359
    %v1399 = vunpack.c.l.b16 %v1360
    %v1400 = vunpack.c.l.b16 %v1361
    %v1401 = vunpack.c.l.b16 %v1362
    %v1402 = vunpack.c.l.b16 %v1363
    %v1403 = vunpack.c.l.b16 %v1364
    %v1404 = vunpack.c.l.b16 %v1365
    %v1405 = vunpack.c.l.b16 %v1366
    %v1406 = vunpack.c.l.b16 %v1367
    %v1407 = vunpack.c.l.b16 %v1368
    %v1408 = vunpack.c.l.b16 %v1369
    %v1409 = vunpack.c.l.b16 %v1370
    %v1410 = vunpack.c.l.b16 %v1371
    %v1411 = vunpack.c.l.b16 %v1372
    %v1412 = vpack.c.b16 %v1397, %v1396
    %v1413 = vpack.c.b16 %v1399, %v1398
    %v1414 = vpack.c.b16 %v1401, %v1400
    %v1415 = vpack.c.b16 %v1403, %v1402
    %v1416 = vpack.c.b16 %v1405, %v1404
    %v1417 = vpack.c.b16 %v1407, %v1406
    %v1418 = vpack.c.b16 %v1409, %v1408
    %v1419 = vpack.c.b16 %v1411, %v1410
    %1428 = vmatprep.subr.bf16.mxu0 0
    %1429 = vmatpush1.bf16.msra.mxu0 %v1412
    %1430 = vmatprep.subr.bf16.mxu0 0
    %1431 = vmatpush1.bf16.msra.mxu0 %v1413
    %1432 = vmatprep.subr.bf16.mxu0 0
    %1433 = vmatpush1.bf16.msra.mxu0 %v1414
    %1434 = vmatprep.subr.bf16.mxu0 0
    %1435 = vmatpush1.bf16.msra.mxu0 %v1415
    %1436 = vmatprep.subr.bf16.mxu0 0
    %1437 = vmatpush1.bf16.msra.mxu0 %v1416
    %1438 = vmatprep.subr.bf16.mxu0 0
    %1439 = vmatpush1.bf16.msra.mxu0 %v1417
    %1440 = vmatprep.subr.bf16.mxu0 0
    %1441 = vmatpush1.bf16.msra.mxu0 %v1418
    %1442 = vmatprep.subr.bf16.mxu0 0
    %1443 = vmatpush1.bf16.msra.mxu0 %v1419
    %1444 = vmatprep.subr.bf16.mxu0 0
    %1445 = vmatpush1.bf16.msra.mxu0 0
    %1446 = vmatprep.subr.bf16.mxu0 0
    %1447 = vmatpush1.bf16.msra.mxu0 0
    %1448 = vmatprep.subr.bf16.mxu0 0
    %1449 = vmatpush1.bf16.msra.mxu0 0
    %1450 = vmatprep.subr.bf16.mxu0 0
    %1451 = vmatpush1.bf16.msra.mxu0 0
    %1452 = vmatprep.subr.bf16.mxu0 0
    %1453 = vmatpush1.bf16.msra.mxu0 0
    %1454 = vmatprep.subr.bf16.mxu0 0
    %1455 = vmatpush1.bf16.msra.mxu0 0
    %1456 = vmatprep.subr.bf16.mxu0 0
    %1457 = vmatpush1.bf16.msra.mxu0 0
    %1458 = vmatprep.subr.bf16.mxu0 0
    %1459 = vmatpush1.bf16.msra.mxu0 0
    %1460 = vmatprep.mubr.bf16.mxu0 0
    %1461 = vmatmul.mubr.bf16.gmra.mrb[0].mxu0 %v1356
    %v1462 = vpop.f32.mrb[0].mxu0
    %v1463 = vadd.f32 %v1378, %v1462
    %v1464 = vpop.f32.mrb[0].mxu0
    %v1465 = vpop.f32.mrb[0].mxu0
    %v1466 = vpop.f32.mrb[0].mxu0
    %1467 = vdwg.mxu0
    %v1468 = vtanh.pop %v1463
    %v1469 = vpack.c.bf16 %v1468, %v1468
    %v1470 = vld [vmem:[#allocation19] sm:$0xff]
    %v1471 = vld [vmem:[#allocation19 + $0x8] sm:$0xff]
    %v1472 = vld [vmem:[#allocation19 + $0x10] sm:$0xff]
    %v1473 = vld [vmem:[#allocation19 + $0x18] sm:$0xf]
    %v1474 = vld [vmem:[#allocation19 + $0x1c] sm:$0xff]
    %v1475 = vld [vmem:[#allocation19 + $0x24] sm:$0xff]
    %v1476 = vld [vmem:[#allocation19 + $0x2c] sm:$0xff]
    %v1477 = vld [vmem:[#allocation19 + $0x34] sm:$0xf]
    %v1478 = vld [vmem:[#allocation19 + $0x38] sm:$0xff]
    %v1479 = vld [vmem:[#allocation19 + $0x40] sm:$0xff]
    %v1480 = vld [vmem:[#allocation19 + $0x48] sm:$0xff]
    %v1481 = vld [vmem:[#allocation19 + $0x50] sm:$0xf]
    %v1482 = vld [vmem:[#allocation19 + $0x54] sm:$0xff]
    %v1483 = vld [vmem:[#allocation19 + $0x5c] sm:$0xff]
    %v1484 = vld [vmem:[#allocation19 + $0x64] sm:$0xff]
    %v1485 = vld [vmem:[#allocation19 + $0x6c] sm:$0xf]
    %v1486 = vld [vmem:[#allocation19 + $0x70] sm:$0xff]
    %v1487 = vld [vmem:[#allocation19 + $0x78] sm:$0xff]
    %v1488 = vld [vmem:[#allocation19 + $0x80] sm:$0xff]
    %v1489 = vld [vmem:[#allocation19 + $0x88] sm:$0xf]
    %v1490 = vld [vmem:[#allocation19 + $0x8c] sm:$0xff]
    %v1491 = vld [vmem:[#allocation19 + $0x94] sm:$0xff]
    %v1492 = vld [vmem:[#allocation19 + $0x9c] sm:$0xff]
    %v1493 = vld [vmem:[#allocation19 + $0xa4] sm:$0xf]
    %v1494 = vld [vmem:[#allocation19 + $0xa8] sm:$0xff]
    %v1495 = vld [vmem:[#allocation19 + $0xb0] sm:$0xff]
    %v1496 = vld [vmem:[#allocation19 + $0xb8] sm:$0xff]
    %v1497 = vld [vmem:[#allocation19 + $0xc0] sm:$0xf]
    %v1498 = vld [vmem:[#allocation19 + $0xc4] sm:$0xff]
    %v1499 = vld [vmem:[#allocation19 + $0xcc] sm:$0xff]
    %v1500 = vld [vmem:[#allocation19 + $0xd4] sm:$0xff]
    %v1501 = vld [vmem:[#allocation19 + $0xdc] sm:$0xf]
    %v1502 = vld [vmem:[#allocation19 + $0xe0] sm:$0xff]
    %v1503 = vld [vmem:[#allocation19 + $0xe8] sm:$0xff]
    %v1504 = vld [vmem:[#allocation19 + $0xf0] sm:$0xff]
    %v1505 = vld [vmem:[#allocation19 + $0xf8] sm:$0xf]
    %v1506 = vld [vmem:[#allocation19 + $0xfc] sm:$0xff]
    %v1507 = vld [vmem:[#allocation19 + $0x104] sm:$0xff]
    %v1508 = vld [vmem:[#allocation19 + $0x10c] sm:$0xff]
    %v1509 = vld [vmem:[#allocation19 + $0x114] sm:$0xf]
    %v1510 = vld [vmem:[#allocation19 + $0x118] sm:$0xff]
    %v1511 = vld [vmem:[#allocation19 + $0x120] sm:$0xff]
    %v1512 = vld [vmem:[#allocation19 + $0x128] sm:$0xff]
    %v1513 = vld [vmem:[#allocation19 + $0x130] sm:$0xf]
    %v1514 = vld [vmem:[#allocation19 + $0x134] sm:$0xff]
    %v1515 = vld [vmem:[#allocation19 + $0x13c] sm:$0xff]
    %v1516 = vld [vmem:[#allocation19 + $0x144] sm:$0xff]
    %v1517 = vld [vmem:[#allocation19 + $0x14c] sm:$0xf]
    %v1518 = vld [vmem:[#allocation19 + $0x150] sm:$0xff]
    %v1519 = vld [vmem:[#allocation19 + $0x158] sm:$0xff]
    %v1520 = vld [vmem:[#allocation19 + $0x160] sm:$0xff]
    %v1521 = vld [vmem:[#allocation19 + $0x168] sm:$0xf]
    %v1522 = vld [vmem:[#allocation19 + $0x16c] sm:$0xff]
    %v1523 = vld [vmem:[#allocation19 + $0x174] sm:$0xff]
    %v1524 = vld [vmem:[#allocation19 + $0x17c] sm:$0xff]
    %v1525 = vld [vmem:[#allocation19 + $0x184] sm:$0xf]
    %v1526 = vld [vmem:[#allocation19 + $0x188] sm:$0xff]
    %v1527 = vld [vmem:[#allocation19 + $0x190] sm:$0xff]
    %v1528 = vld [vmem:[#allocation19 + $0x198] sm:$0xff]
    %v1529 = vld [vmem:[#allocation19 + $0x1a0] sm:$0xf]
    %v1530 = vld [vmem:[#allocation19 + $0x1a4] sm:$0xff]
    %v1531 = vld [vmem:[#allocation19 + $0x1ac] sm:$0xff]
    %v1532 = vld [vmem:[#allocation19 + $0x1b4] sm:$0xff]
    %v1533 = vld [vmem:[#allocation19 + $0x1bc] sm:$0xf]
    %v1534 = vld [vmem:[%s16] sm:$0xff]
    %v1536 = vlaneseq
    %v1537 = vshrl.u32 %v1536, 7
    %v1538 = vsub.s32 0, %v1537
    %v1539 = vrot.slane %v1534, %v1538
    %v1540 = vlaneseq
    %v1541 = vshrl.u32 %v1540, 7
    %v1542 = vsub.s32 1, %v1541
    %v1543 = vrot.slane %v1534, %v1542
    %v1544 = vlaneseq
    %v1545 = vshrl.u32 %v1544, 7
    %v1546 = vsub.s32 2, %v1545
    %v1547 = vrot.slane %v1534, %v1546
    %v1548 = vlaneseq
    %v1549 = vshrl.u32 %v1548, 7
    %v1550 = vsub.s32 3, %v1549
    %v1551 = vrot.slane %v1534, %v1550
    %v1552 = vlaneseq
    %v1553 = vshrl.u32 %v1552, 7
    %v1554 = vsub.s32 4, %v1553
    %v1555 = vrot.slane %v1534, %v1554
    %v1556 = vlaneseq
    %v1557 = vshrl.u32 %v1556, 7
    %v1558 = vsub.s32 5, %v1557
    %v1559 = vrot.slane %v1534, %v1558
    %v1560 = vlaneseq
    %v1561 = vshrl.u32 %v1560, 7
    %v1562 = vsub.s32 6, %v1561
    %v1563 = vrot.slane %v1534, %v1562
    %v1635 = vunpack.c.l.b16 %v1470
    %v1636 = vunpack.c.h.b16 %v1470
    %v1637 = vunpack.c.l.b16 %v1471
    %v1638 = vunpack.c.h.b16 %v1471
    %v1639 = vunpack.c.l.b16 %v1472
    %v1640 = vunpack.c.h.b16 %v1472
    %v1641 = vunpack.c.l.b16 %v1473
    %v1642 = vunpack.c.l.b16 %v1474
    %v1643 = vunpack.c.h.b16 %v1474
    %v1644 = vunpack.c.l.b16 %v1475
    %v1645 = vunpack.c.h.b16 %v1475
    %v1646 = vunpack.c.l.b16 %v1476
    %v1647 = vunpack.c.h.b16 %v1476
    %v1648 = vunpack.c.l.b16 %v1477
    %v1649 = vunpack.c.l.b16 %v1478
    %v1650 = vunpack.c.h.b16 %v1478
    %v1651 = vunpack.c.l.b16 %v1479
    %v1652 = vunpack.c.h.b16 %v1479
    %v1653 = vunpack.c.l.b16 %v1480
    %v1654 = vunpack.c.h.b16 %v1480
    %v1655 = vunpack.c.l.b16 %v1481
    %v1656 = vunpack.c.l.b16 %v1482
    %v1657 = vunpack.c.h.b16 %v1482
    %v1658 = vunpack.c.l.b16 %v1483
    %v1659 = vunpack.c.h.b16 %v1483
    %v1660 = vunpack.c.l.b16 %v1484
    %v1661 = vunpack.c.h.b16 %v1484
    %v1662 = vunpack.c.l.b16 %v1485
    %v1663 = vunpack.c.l.b16 %v1486
    %v1664 = vunpack.c.h.b16 %v1486
    %v1665 = vunpack.c.l.b16 %v1487
    %v1666 = vunpack.c.h.b16 %v1487
    %v1667 = vunpack.c.l.b16 %v1488
    %v1668 = vunpack.c.h.b16 %v1488
    %v1669 = vunpack.c.l.b16 %v1489
    %v1670 = vunpack.c.l.b16 %v1490
    %v1671 = vunpack.c.h.b16 %v1490
    %v1672 = vunpack.c.l.b16 %v1491
    %v1673 = vunpack.c.h.b16 %v1491
    %v1674 = vunpack.c.l.b16 %v1492
    %v1675 = vunpack.c.h.b16 %v1492
    %v1676 = vunpack.c.l.b16 %v1493
    %v1677 = vunpack.c.l.b16 %v1494
    %v1678 = vunpack.c.h.b16 %v1494
    %v1679 = vunpack.c.l.b16 %v1495
    %v1680 = vunpack.c.h.b16 %v1495
    %v1681 = vunpack.c.l.b16 %v1496
    %v1682 = vunpack.c.h.b16 %v1496
    %v1683 = vunpack.c.l.b16 %v1497
    %v1684 = vunpack.c.l.b16 %v1498
    %v1685 = vunpack.c.h.b16 %v1498
    %v1686 = vunpack.c.l.b16 %v1499
    %v1687 = vunpack.c.h.b16 %v1499
    %v1688 = vunpack.c.l.b16 %v1500
    %v1689 = vunpack.c.h.b16 %v1500
    %v1690 = vunpack.c.l.b16 %v1501
    %v1691 = vunpack.c.l.b16 %v1502
    %v1692 = vunpack.c.h.b16 %v1502
    %v1693 = vunpack.c.l.b16 %v1503
    %v1694 = vunpack.c.h.b16 %v1503
    %v1695 = vunpack.c.l.b16 %v1504
    %v1696 = vunpack.c.h.b16 %v1504
    %v1697 = vunpack.c.l.b16 %v1505
    %v1698 = vunpack.c.l.b16 %v1506
    %v1699 = vunpack.c.h.b16 %v1506
    %v1700 = vunpack.c.l.b16 %v1507
    %v1701 = vunpack.c.h.b16 %v1507
    %v1702 = vunpack.c.l.b16 %v1508
    %v1703 = vunpack.c.h.b16 %v1508
    %v1704 = vunpack.c.l.b16 %v1509
    %v1705 = vunpack.c.l.b16 %v1510
    %v1706 = vunpack.c.h.b16 %v1510
    %v1707 = vunpack.c.l.b16 %v1511
    %v1708 = vunpack.c.h.b16 %v1511
    %v1709 = vunpack.c.l.b16 %v1512
    %v1710 = vunpack.c.h.b16 %v1512
    %v1711 = vunpack.c.l.b16 %v1513
    %v1712 = vunpack.c.l.b16 %v1514
    %v1713 = vunpack.c.h.b16 %v1514
    %v1714 = vunpack.c.l.b16 %v1515
    %v1715 = vunpack.c.h.b16 %v1515
    %v1716 = vunpack.c.l.b16 %v1516
    %v1717 = vunpack.c.h.b16 %v1516
    %v1718 = vunpack.c.l.b16 %v1517
    %v1719 = vunpack.c.l.b16 %v1518
    %v1720 = vunpack.c.h.b16 %v1518
    %v1721 = vunpack.c.l.b16 %v1519
    %v1722 = vunpack.c.h.b16 %v1519
    %v1723 = vunpack.c.l.b16 %v1520
    %v1724 = vunpack.c.h.b16 %v1520
    %v1725 = vunpack.c.l.b16 %v1521
    %v1726 = vunpack.c.l.b16 %v1522
    %v1727 = vunpack.c.h.b16 %v1522
    %v1728 = vunpack.c.l.b16 %v1523
    %v1729 = vunpack.c.h.b16 %v1523
    %v1730 = vunpack.c.l.b16 %v1524
    %v1731 = vunpack.c.h.b16 %v1524
    %v1732 = vunpack.c.l.b16 %v1525
    %v1733 = vunpack.c.l.b16 %v1526
    %v1734 = vunpack.c.h.b16 %v1526
    %v1735 = vunpack.c.l.b16 %v1527
    %v1736 = vunpack.c.h.b16 %v1527
    %v1737 = vunpack.c.l.b16 %v1528
    %v1738 = vunpack.c.h.b16 %v1528
    %v1739 = vunpack.c.l.b16 %v1529
    %v1740 = vunpack.c.l.b16 %v1530
    %v1741 = vunpack.c.h.b16 %v1530
    %v1742 = vunpack.c.l.b16 %v1531
    %v1743 = vunpack.c.h.b16 %v1531
    %v1744 = vunpack.c.l.b16 %v1532
    %v1745 = vunpack.c.h.b16 %v1532
    %v1746 = vunpack.c.l.b16 %v1533
    %v1747 = vpack.c.b16 %v1642, %v1635
    %v1748 = vpack.c.b16 %v1643, %v1636
    %v1749 = vpack.c.b16 %v1644, %v1637
    %v1750 = vpack.c.b16 %v1645, %v1638
    %v1751 = vpack.c.b16 %v1646, %v1639
    %v1752 = vpack.c.b16 %v1647, %v1640
    %v1753 = vpack.c.b16 %v1648, %v1641
    %v1754 = vpack.c.b16 %v1656, %v1649
    %v1755 = vpack.c.b16 %v1657, %v1650
    %v1756 = vpack.c.b16 %v1658, %v1651
    %v1757 = vpack.c.b16 %v1659, %v1652
    %v1758 = vpack.c.b16 %v1660, %v1653
    %v1759 = vpack.c.b16 %v1661, %v1654
    %v1760 = vpack.c.b16 %v1662, %v1655
    %v1761 = vpack.c.b16 %v1670, %v1663
    %v1762 = vpack.c.b16 %v1671, %v1664
    %v1763 = vpack.c.b16 %v1672, %v1665
    %v1764 = vpack.c.b16 %v1673, %v1666
    %v1765 = vpack.c.b16 %v1674, %v1667
    %v1766 = vpack.c.b16 %v1675, %v1668
    %v1767 = vpack.c.b16 %v1676, %v1669
    %v1768 = vpack.c.b16 %v1684, %v1677
    %v1769 = vpack.c.b16 %v1685, %v1678
    %v1770 = vpack.c.b16 %v1686, %v1679
    %v1771 = vpack.c.b16 %v1687, %v1680
    %v1772 = vpack.c.b16 %v1688, %v1681
    %v1773 = vpack.c.b16 %v1689, %v1682
    %v1774 = vpack.c.b16 %v1690, %v1683
    %v1775 = vpack.c.b16 %v1698, %v1691
    %v1776 = vpack.c.b16 %v1699, %v1692
    %v1777 = vpack.c.b16 %v1700, %v1693
    %v1778 = vpack.c.b16 %v1701, %v1694
    %v1779 = vpack.c.b16 %v1702, %v1695
    %v1780 = vpack.c.b16 %v1703, %v1696
    %v1781 = vpack.c.b16 %v1704, %v1697
    %v1782 = vpack.c.b16 %v1712, %v1705
    %v1783 = vpack.c.b16 %v1713, %v1706
    %v1784 = vpack.c.b16 %v1714, %v1707
    %v1785 = vpack.c.b16 %v1715, %v1708
    %v1786 = vpack.c.b16 %v1716, %v1709
    %v1787 = vpack.c.b16 %v1717, %v1710
    %v1788 = vpack.c.b16 %v1718, %v1711
    %v1789 = vpack.c.b16 %v1726, %v1719
    %v1790 = vpack.c.b16 %v1727, %v1720
    %v1791 = vpack.c.b16 %v1728, %v1721
    %v1792 = vpack.c.b16 %v1729, %v1722
    %v1793 = vpack.c.b16 %v1730, %v1723
    %v1794 = vpack.c.b16 %v1731, %v1724
    %v1795 = vpack.c.b16 %v1732, %v1725
    %v1796 = vpack.c.b16 %v1740, %v1733
    %v1797 = vpack.c.b16 %v1741, %v1734
    %v1798 = vpack.c.b16 %v1742, %v1735
    %v1799 = vpack.c.b16 %v1743, %v1736
    %v1800 = vpack.c.b16 %v1744, %v1737
    %v1801 = vpack.c.b16 %v1745, %v1738
    %v1802 = vpack.c.b16 %v1746, %v1739
    %1859 = vmatprep.subr.bf16.mxu0 %v1748
    %1860 = vmatpush1.bf16.msra.mxu0 %v1747
    %1861 = vmatprep.subr.bf16.mxu0 %v1755
    %1862 = vmatpush1.bf16.msra.mxu0 %v1754
    %1863 = vmatprep.subr.bf16.mxu0 %v1762
    %1864 = vmatpush1.bf16.msra.mxu0 %v1761
    %1865 = vmatprep.subr.bf16.mxu0 %v1769
    %1866 = vmatpush1.bf16.msra.mxu0 %v1768
    %1867 = vmatprep.subr.bf16.mxu0 %v1776
    %1868 = vmatpush1.bf16.msra.mxu0 %v1775
    %1869 = vmatprep.subr.bf16.mxu0 %v1783
    %1870 = vmatpush1.bf16.msra.mxu0 %v1782
    %1871 = vmatprep.subr.bf16.mxu0 %v1790
    %1872 = vmatpush1.bf16.msra.mxu0 %v1789
    %1873 = vmatprep.subr.bf16.mxu0 %v1797
    %1874 = vmatpush1.bf16.msra.mxu0 %v1796
    %1875 = vmatprep.subr.bf16.mxu0 0
    %1876 = vmatpush1.bf16.msra.mxu0 0
    %1877 = vmatprep.subr.bf16.mxu0 0
    %1878 = vmatpush1.bf16.msra.mxu0 0
    %1879 = vmatprep.subr.bf16.mxu0 0
    %1880 = vmatpush1.bf16.msra.mxu0 0
    %1881 = vmatprep.subr.bf16.mxu0 0
    %1882 = vmatpush1.bf16.msra.mxu0 0
    %1883 = vmatprep.subr.bf16.mxu0 0
    %1884 = vmatpush1.bf16.msra.mxu0 0
    %1885 = vmatprep.subr.bf16.mxu0 0
    %1886 = vmatpush1.bf16.msra.mxu0 0
    %1887 = vmatprep.subr.bf16.mxu0 0
    %1888 = vmatpush1.bf16.msra.mxu0 0
    %1889 = vmatprep.subr.bf16.mxu0 0
    %1890 = vmatpush1.bf16.msra.mxu0 0
    %1891 = vmatprep.mubr.bf16.mxu0 0
    %1892 = vmatmul.mubr.bf16.gmra.mrb[0].mxu0 %v1469
    %v1893 = vpop.f32.mrb[0].mxu0
    %v1894 = vadd.f32 %v1539, %v1893
    %v1895 = vpop.f32.mrb[0].mxu0
    %v1896 = vadd.f32 %v1543, %v1895
    %v1897 = vpop.f32.mrb[0].mxu0
    %v1898 = vpop.f32.mrb[0].mxu0
    %1899 = vdwg.mxu0
    %1900 = vmatprep.subr.bf16.mxu0 %v1750
    %1901 = vmatpush1.bf16.msra.mxu0 %v1749
    %1902 = vmatprep.subr.bf16.mxu0 %v1757
    %1903 = vmatpush1.bf16.msra.mxu0 %v1756
    %1904 = vmatprep.subr.bf16.mxu0 %v1764
    %1905 = vmatpush1.bf16.msra.mxu0 %v1763
    %1906 = vmatprep.subr.bf16.mxu0 %v1771
    %1907 = vmatpush1.bf16.msra.mxu0 %v1770
    %1908 = vmatprep.subr.bf16.mxu0 %v1778
    %1909 = vmatpush1.bf16.msra.mxu0 %v1777
    %1910 = vmatprep.subr.bf16.mxu0 %v1785
    %1911 = vmatpush1.bf16.msra.mxu0 %v1784
    %1912 = vmatprep.subr.bf16.mxu0 %v1792
    %1913 = vmatpush1.bf16.msra.mxu0 %v1791
    %1914 = vmatprep.subr.bf16.mxu0 %v1799
    %1915 = vmatpush1.bf16.msra.mxu0 %v1798
    %1916 = vmatprep.subr.bf16.mxu0 0
    %1917 = vmatpush1.bf16.msra.mxu0 0
    %1918 = vmatprep.subr.bf16.mxu0 0
    %1919 = vmatpush1.bf16.msra.mxu0 0
    %1920 = vmatprep.subr.bf16.mxu0 0
    %1921 = vmatpush1.bf16.msra.mxu0 0
    %1922 = vmatprep.subr.bf16.mxu0 0
    %1923 = vmatpush1.bf16.msra.mxu0 0
    %1924 = vmatprep.subr.bf16.mxu0 0
    %1925 = vmatpush1.bf16.msra.mxu0 0
    %1926 = vmatprep.subr.bf16.mxu0 0
    %1927 = vmatpush1.bf16.msra.mxu0 0
    %1928 = vmatprep.subr.bf16.mxu0 0
    %1929 = vmatpush1.bf16.msra.mxu0 0
    %1930 = vmatprep.subr.bf16.mxu0 0
    %1931 = vmatpush1.bf16.msra.mxu0 0
    %1932 = vmatprep.mubr.bf16.mxu0 0
    %1933 = vmatmul.mubr.bf16.gmra.mrb[0].mxu0 %v1469
    %v1934 = vpop.f32.mrb[0].mxu0
    %v1935 = vadd.f32 %v1547, %v1934
    %v1936 = vpop.f32.mrb[0].mxu0
    %v1937 = vadd.f32 %v1551, %v1936
    %v1938 = vpop.f32.mrb[0].mxu0
    %v1939 = vpop.f32.mrb[0].mxu0
    %1940 = vdwg.mxu0
    %1941 = vmatprep.subr.bf16.mxu0 %v1752
    %1942 = vmatpush1.bf16.msra.mxu0 %v1751
    %1943 = vmatprep.subr.bf16.mxu0 %v1759
    %1944 = vmatpush1.bf16.msra.mxu0 %v1758
    %1945 = vmatprep.subr.bf16.mxu0 %v1766
    %1946 = vmatpush1.bf16.msra.mxu0 %v1765
    %1947 = vmatprep.subr.bf16.mxu0 %v1773
    %1948 = vmatpush1.bf16.msra.mxu0 %v1772
    %1949 = vmatprep.subr.bf16.mxu0 %v1780
    %1950 = vmatpush1.bf16.msra.mxu0 %v1779
    %1951 = vmatprep.subr.bf16.mxu0 %v1787
    %1952 = vmatpush1.bf16.msra.mxu0 %v1786
    %1953 = vmatprep.subr.bf16.mxu0 %v1794
    %1954 = vmatpush1.bf16.msra.mxu0 %v1793
    %1955 = vmatprep.subr.bf16.mxu0 %v1801
    %1956 = vmatpush1.bf16.msra.mxu0 %v1800
    %1957 = vmatprep.subr.bf16.mxu0 0
    %1958 = vmatpush1.bf16.msra.mxu0 0
    %1959 = vmatprep.subr.bf16.mxu0 0
    %1960 = vmatpush1.bf16.msra.mxu0 0
    %1961 = vmatprep.subr.bf16.mxu0 0
    %1962 = vmatpush1.bf16.msra.mxu0 0
    %1963 = vmatprep.subr.bf16.mxu0 0
    %1964 = vmatpush1.bf16.msra.mxu0 0
    %1965 = vmatprep.subr.bf16.mxu0 0
    %1966 = vmatpush1.bf16.msra.mxu0 0
    %1967 = vmatprep.subr.bf16.mxu0 0
    %1968 = vmatpush1.bf16.msra.mxu0 0
    %1969 = vmatprep.subr.bf16.mxu0 0
    %1970 = vmatpush1.bf16.msra.mxu0 0
    %1971 = vmatprep.subr.bf16.mxu0 0
    %1972 = vmatpush1.bf16.msra.mxu0 0
    %1973 = vmatprep.mubr.bf16.mxu0 0
    %1974 = vmatmul.mubr.bf16.gmra.mrb[0].mxu0 %v1469
    %v1975 = vpop.f32.mrb[0].mxu0
    %v1976 = vadd.f32 %v1555, %v1975
    %v1977 = vpop.f32.mrb[0].mxu0
    %v1978 = vadd.f32 %v1559, %v1977
    %v1979 = vpop.f32.mrb[0].mxu0
    %v1980 = vpop.f32.mrb[0].mxu0
    %1981 = vdwg.mxu0
    %1982 = vmatprep.subr.bf16.mxu0 0
    %1983 = vmatpush1.bf16.msra.mxu0 %v1753
    %1984 = vmatprep.subr.bf16.mxu0 0
    %1985 = vmatpush1.bf16.msra.mxu0 %v1760
    %1986 = vmatprep.subr.bf16.mxu0 0
    %1987 = vmatpush1.bf16.msra.mxu0 %v1767
    %1988 = vmatprep.subr.bf16.mxu0 0
    %1989 = vmatpush1.bf16.msra.mxu0 %v1774
    %1990 = vmatprep.subr.bf16.mxu0 0
    %1991 = vmatpush1.bf16.msra.mxu0 %v1781
    %1992 = vmatprep.subr.bf16.mxu0 0
    %1993 = vmatpush1.bf16.msra.mxu0 %v1788
    %1994 = vmatprep.subr.bf16.mxu0 0
    %1995 = vmatpush1.bf16.msra.mxu0 %v1795
    %1996 = vmatprep.subr.bf16.mxu0 0
    %1997 = vmatpush1.bf16.msra.mxu0 %v1802
    %1998 = vmatprep.subr.bf16.mxu0 0
    %1999 = vmatpush1.bf16.msra.mxu0 0
    %2000 = vmatprep.subr.bf16.mxu0 0
    %2001 = vmatpush1.bf16.msra.mxu0 0
    %2002 = vmatprep.subr.bf16.mxu0 0
    %2003 = vmatpush1.bf16.msra.mxu0 0
    %2004 = vmatprep.subr.bf16.mxu0 0
    %2005 = vmatpush1.bf16.msra.mxu0 0
    %2006 = vmatprep.subr.bf16.mxu0 0
    %2007 = vmatpush1.bf16.msra.mxu0 0
    %2008 = vmatprep.subr.bf16.mxu0 0
    %2009 = vmatpush1.bf16.msra.mxu0 0
    %2010 = vmatprep.subr.bf16.mxu0 0
    %2011 = vmatpush1.bf16.msra.mxu0 0
    %2012 = vmatprep.subr.bf16.mxu0 0
    %2013 = vmatpush1.bf16.msra.mxu0 0
    %2014 = vmatprep.mubr.bf16.mxu0 0
    %2015 = vmatmul.mubr.bf16.gmra.mrb[0].mxu0 %v1469
    %v2016 = vpop.f32.mrb[0].mxu0
    %v2017 = vadd.f32 %v1563, %v2016
    %v2018 = vpop.f32.mrb[0].mxu0
    %v2019 = vpop.f32.mrb[0].mxu0
    %v2020 = vpop.f32.mrb[0].mxu0
    %2021 = vdwg.mxu0
    %v2022 = vmul.f32 %v1894, 0.5
    %v2023 = vmul.f32 %v1896, 0.5
    %v2024 = vmul.f32 %v1935, 0.5
    %v2025 = vmul.f32 %v1937, 0.5
    %v2026 = vmul.f32 %v1976, 0.5
    %v2027 = vmul.f32 %v1978, 0.5
    %v2028 = vmul.f32 %v2017, 0.5
    %v2029 = vtanh.pop %v2022
    %v2030 = vtanh.pop %v2023
    %v2031 = vtanh.pop %v2024
    %v2032 = vtanh.pop %v2025
    %v2033 = vtanh.pop %v2026
    %v2034 = vtanh.pop %v2027
    %v2035 = vtanh.pop %v2028
    %v2036 = vadd.f32 %v2029, 1.0
    %v2037 = vadd.f32 %v2030, 1.0
    %v2038 = vadd.f32 %v2031, 1.0
    %v2039 = vadd.f32 %v2032, 1.0
    %v2040 = vadd.f32 %v2033, 1.0
    %v2041 = vadd.f32 %v2034, 1.0
    %v2042 = vadd.f32 %v2035, 1.0
    %v2043 = vmul.f32 %v2036, 0.5
    %v2044 = vmul.f32 %v2037, 0.5
    %v2045 = vmul.f32 %v2038, 0.5
    %v2046 = vmul.f32 %v2039, 0.5
    %v2047 = vmul.f32 %v2040, 0.5
    %v2048 = vmul.f32 %v2041, 0.5
    %v2049 = vmul.f32 %v2042, 0.5
    %2050 = vst [vmem:[#allocation20] sm:$0xff] %v2043
    %2051 = vst [vmem:[#allocation20 + $0x8] sm:$0xff] %v2044
    %2052 = vst [vmem:[#allocation20 + $0x10] sm:$0xff] %v2045
    %2053 = vst [vmem:[#allocation20 + $0x18] sm:$0xff] %v2046
    %2054 = vst [vmem:[#allocation20 + $0x20] sm:$0xff] %v2047
    %2055 = vst [vmem:[#allocation20 + $0x28] sm:$0xff] %v2048
    %2056 = vst [vmem:[#allocation20 + $0x30] sm:$0xff] %v2049
    // Predicated region
    $region114: #{autoencoder_forward.1} parent=1 // pred_check
      _
    $region115: #{autoencoder_forward.1} parent=1 // pred_check_branch
      %2058 = sbr.rel (0) target = $region117
    $region116: #{autoencoder_forward.1} parent=1 // pred_region
      _
    $region117: #{autoencoder_forward.1} parent=1 // pred_fallthru
      _
    // Predicated region
    $region118: #{autoencoder_forward.1} parent=1 // pred_check
      _
    $region119: #{autoencoder_forward.1} parent=1 // pred_check_branch
      %2060 = sbr.rel (0) target = $region121
    $region120: #{autoencoder_forward.1} parent=1 // pred_region
      %s2062 = ssub.s32 896, 896
      %2063 = vsyncadd [#allocation4], %s2062
      %s2065 = sshll.u32 [#allocation20], 4
      %s2066 = int_to_ptr.vmem [resolvable:$true] %s2065
      %2068 = dma.vmem_to_hbm [thread:$0]  %s2066, 896, %s18, [#allocation4]
    $region121: #{autoencoder_forward.1} parent=1 // pred_fallthru
      _
    // Predicated region
    $region122: #{autoencoder_forward.1} parent=1 // pred_check
      _
    $region123: #{autoencoder_forward.1} parent=1 // pred_check_branch
      %2070 = sbr.rel (0) target = $region125
    $region124: #{autoencoder_forward.1} parent=1 // pred_region
      _
    $region125: #{autoencoder_forward.1} parent=1 // pred_fallthru
      _
    // Predicated region
    $region126: #{autoencoder_forward.1} parent=1 // pred_check
      _
    $region127: #{autoencoder_forward.1} parent=1 // pred_check_branch
      %2072 = sbr.rel (0) target = $region129
    $region128: #{autoencoder_forward.1} parent=1 // pred_region
      %2073 = dma.done [#allocation4], 896
    $region129: #{autoencoder_forward.1} parent=1 // pred_fallthru
      _
    %2074 = vsyncpa [#allocation3], 1
    %2075 = vsyncpa [#allocation6], 1
    %2076 = vsyncpa [#allocation9], 1
    %2077 = vsyncpa [#allocation12], 1
    %2078 = vsyncpa [#allocation15], 1
    %2079 = vsyncpa [#allocation18], 1
    %2080 = vsyncpa [#allocation4], 1

</llo_original>
